<compile_context>
chip_gen: v7x
topology: tpu7x:2x2x1
jax: 0.10.0
libtpu: 0.0.40
codegen_flags: <defaults>
</compile_context>

<pallas_src>
import math
from functools import partial

import jax
import jax.numpy as jnp
import numpy as np
from jax.experimental import pallas as pl
from jax.experimental.pallas import tpu as pltpu


def _resblock_kernel(xm_ref, xh_ref, idn_ref, w1_ref, b1_ref, w2_ref, b2_ref,
                     out_ref, a1_ref, *, th, w_img, c, kp, h_img, q_last):
    # xm_ref : (1, TH,  W+2, C) bf16   main rows of the zero-padded input
    # xh_ref : (1, 4,   W+2, C) bf16   4-row bottom halo of the same padded input
    # idn_ref: (1, TH,  W,   C) f32    identity (residual) rows, exact
    # w*_ref : (3, KP, C)      bf16    per-ky weights, (kx, ci) folded into K, zero-padded to KP
    # b*_ref : (1, C)          f32
    # out_ref: (1, TH, W, C)
    # a1_ref : (TH+2, W+2, C)  bf16    VMEM scratch: W-padded conv1 activation
    q = pl.program_id(1)
    kpad = kp - 3 * c

    # Haloed input rows for this tile: (TH+4, W+2, C).
    xs = jnp.concatenate([xm_ref[0], xh_ref[0]], axis=0)

    def conv(src, rows, w_ref):
        m = rows * w_img
        acc = jnp.zeros((m, c), jnp.float32)
        for ky in range(3):
            parts = [src[ky:ky + rows, kx:kx + w_img, :] for kx in range(3)]
            if kpad:
                parts.append(jnp.zeros((rows, w_img, kpad), jnp.bfloat16))
            patch = jnp.concatenate(parts, axis=-1).reshape(m, kp)
            acc = acc + jnp.dot(patch, w_ref[ky],
                                preferred_element_type=jnp.float32)
        return acc

    # ---- conv1 + bias + ReLU over TH+2 rows (1-row halo each side for conv2) ----
    a1 = jnp.maximum(conv(xs, th + 2, w1_ref) + b1_ref[...], 0.0)
    a1 = a1.astype(jnp.bfloat16).reshape(th + 2, w_img, c)

    # Stage in VMEM scratch, already zero-padded in W for conv2.
    zc = jnp.zeros((th + 2, 1, c), jnp.bfloat16)
    a1_ref[...] = jnp.concatenate([zc, a1, zc], axis=1)

    # conv2's zero padding in H: only boundary tiles touch out-of-image rows.
    @pl.when(q == 0)
    def _():
        a1_ref[0:1, :, :] = jnp.zeros((1, w_img + 2, c), jnp.bfloat16)

    @pl.when(q == q_last)
    def _():
        lo = h_img - q_last * th + 1           # static; == TH+1 when H % TH == 0
        a1_ref[lo:th + 2, :, :] = jnp.zeros((th + 2 - lo, w_img + 2, c),
                                            jnp.bfloat16)

    # ---- conv2 + bias + exact f32 residual add ----
    res = conv(a1_ref[...], th, w2_ref) + b2_ref[...]
    out = idn_ref[0].reshape(th * w_img, c) + res
    out_ref[...] = out.reshape(1, th, w_img, c).astype(out_ref.dtype)


def _vmem_bytes(shape, itemsize):
    # Rough VMEM footprint of a block: minor dim padded to 128 lanes, second-minor to
    # the dtype sublane multiple.
    sub = 32 // itemsize
    s = list(shape)
    s[-1] = -(-s[-1] // 128) * 128
    s[-2] = -(-s[-2] // sub) * sub
    n = 1
    for d in s:
        n *= d
    return n * itemsize


def _estimate_vmem(th, w, c, kp):
    est = 0
    est += 2 * _vmem_bytes((th, w + 2, c), 2)        # main input block (double-buffered)
    est += 2 * _vmem_bytes((4, w + 2, c), 2)         # halo block
    est += 2 * _vmem_bytes((th, w, c), 4)            # f32 identity block
    est += 2 * _vmem_bytes((th, w, c), 4)            # f32 output block
    est += _vmem_bytes((th + 2, w + 2, c), 2)        # a1 scratch
    est += 4 * _vmem_bytes((kp, c), 2)               # weights / biases
    # im2col patch + f32 accumulator temporaries (both convs)
    est += 2 * _vmem_bytes((th + 2, w, kp), 2)
    est += 2 * _vmem_bytes(((th + 2) * w, c), 4)
    return int(est * 1.5)


def _pick_tile(h, w, c, kp):
    try:
        kind = jax.devices()[0].device_kind.lower()
    except Exception:
        kind = ""
    big_vmem = any(v in kind for v in ("v2", "v3", "v4", "v5", "v6"))
    cap = (100 if big_vmem else 56) * 1024 * 1024    # v7x: 64 MiB physical VMEM
    cands = [t for t in (64, 32, 16, 8) if 2 * t <= h] or [8]
    th = next((t for t in cands if _estimate_vmem(t, w, c, kp) <= cap), 8)
    limit = int(min(cap, max(32 * 1024 * 1024, _estimate_vmem(th, w, c, kp))))
    return th, limit


def residual_block_nobn(x_nchw, w1, b1, w2, b2):
    """x_nchw: (N, C, H, W); w1,w2: (3, 3, C, C) HWIO; b1,b2: (C,). Returns NCHW."""
    N, C, H, W = x_nchw.shape
    KP = -(-3 * C // 16) * 16                        # contraction padded for bf16 packing
    TH, vmem_limit = _pick_tile(H, W, C, KP)
    Q = -(-H // TH)
    Hp = Q * TH

    # NCHW -> NHWC once. Conv path: bf16, zero-padded 2 rows top / Hp-H+2 bottom and
    # 1 column each side, channels kept at real C. Identity path: exact f32 rows.
    xn = jnp.transpose(x_nchw, (0, 2, 3, 1))
    xpad = jnp.pad(xn, ((0, 0), (2, Hp - H + 2), (1, 1), (0, 0))).astype(jnp.bfloat16)
    idn = xn if Hp == H else jnp.pad(xn, ((0, 0), (0, Hp - H), (0, 0), (0, 0)))

    def prep_w(w):   # (3,3,C,C) HWIO -> (3, KP, C) bf16, (kx, ci) folded into K
        wk = w.reshape(3, 3 * C, C)
        return jnp.pad(wk, ((0, 0), (0, KP - 3 * C), (0, 0))).astype(jnp.bfloat16)

    w1g, w2g = prep_w(w1), prep_w(w2)
    b1p = b1.reshape(1, C).astype(jnp.float32)
    b2p = b2.reshape(1, C).astype(jnp.float32)

    kernel = partial(_resblock_kernel, th=TH, w_img=W, c=C, kp=KP, h_img=H,
                     q_last=Q - 1)

    out = pl.pallas_call(
        kernel,
        out_shape=jax.ShapeDtypeStruct((N, Hp, W, C), x_nchw.dtype),
        grid_spec=pltpu.PrefetchScalarGridSpec(
            num_scalar_prefetch=0,
            grid=(N, Q),
            in_specs=[
                # TH main rows + 4-row halo of the same padded bf16 image.
                pl.BlockSpec((1, TH, W + 2, C), lambda n, q: (n, q, 0, 0)),
                pl.BlockSpec((1, 4, W + 2, C),
                             lambda n, q: (n, (q + 1) * (TH // 4), 0, 0)),
                # f32 identity rows (exact residual).
                pl.BlockSpec((1, TH, W, C), lambda n, q: (n, q, 0, 0)),
                pl.BlockSpec((3, KP, C), lambda n, q: (0, 0, 0)),
                pl.BlockSpec((1, C), lambda n, q: (0, 0)),
                pl.BlockSpec((3, KP, C), lambda n, q: (0, 0, 0)),
                pl.BlockSpec((1, C), lambda n, q: (0, 0)),
            ],
            out_specs=pl.BlockSpec((1, TH, W, C), lambda n, q: (n, q, 0, 0)),
            scratch_shapes=[pltpu.VMEM((TH + 2, W + 2, C), jnp.bfloat16)],
        ),
        compiler_params=pltpu.CompilerParams(
            dimension_semantics=("parallel", "parallel"),
            vmem_limit_bytes=vmem_limit,
        ),
    )(xpad, xpad, idn, w1g, b1p, w2g, b2p)

    out = out if Hp == H else out[:, :H]
    return jnp.transpose(out, (0, 3, 1, 2))


def _reference(x_nchw, w1, b1, w2, b2):
    # Pure-JAX f32 reference (same math as the PyTorch module).
    x = jnp.transpose(x_nchw, (0, 2, 3, 1))
    dn = ("NHWC", "HWIO", "NHWC")
    o = jax.lax.conv_general_dilated(x, w1, (1, 1), "SAME", dimension_numbers=dn) + b1
    o = jnp.maximum(o, 0.0)
    o = jax.lax.conv_general_dilated(o, w2, (1, 1), "SAME", dimension_numbers=dn) + b2
    return jnp.transpose(x + o, (0, 3, 1, 2))


if __name__ == "__main__":
    # Small shapes consistent with the module: channels (nf) = 4, N = 2, 16x16 spatial.
    N, C, H, W = 2, 4, 16, 16

    key = jax.random.PRNGKey(0)
    k1, k2, kx = jax.random.split(key, 3)

    # Deterministic init mirroring initialize_weights(..., scale=0.1):
    # kaiming_normal_(a=0, fan_in) -> std = sqrt(2 / (C_in*3*3)), then * 0.1; bias = 0.
    fan_in = C * 3 * 3
    std = math.sqrt(2.0 / fan_in)
    w1 = (jax.random.normal(k1, (3, 3, C, C), jnp.float32) * std) * 0.1  # HWIO
    w2 = (jax.random.normal(k2, (3, 3, C, C), jnp.float32) * std) * 0.1  # HWIO
    b1 = jnp.zeros((C,), jnp.float32)
    b2 = jnp.zeros((C,), jnp.float32)

    x = jax.random.normal(kx, (N, C, H, W), jnp.float32)  # NCHW, like PyTorch

    out = jax.block_until_ready(residual_block_nobn(x, w1, b1, w2, b2))
    ref = jax.block_until_ready(_reference(x, w1, b1, w2, b2))

    # bf16 conv path with f32 accumulation and exact f32 residual.
    np.testing.assert_allclose(np.asarray(out), np.asarray(ref), atol=1e-2, rtol=1e-2)

    print("KERNEL_OK")
</pallas_src>

<mosaic_0001>
module attributes {stable_mosaic.version = 11 : i64} {
  func.func @_resblock_kernel(%arg0: i32, %arg1: i32, %arg2: memref<1x8x18x4xbf16, #tpu.memory_space<vmem>>, %arg3: memref<1x4x18x4xbf16, #tpu.memory_space<vmem>>, %arg4: memref<1x8x16x4xf32, #tpu.memory_space<vmem>>, %arg5: memref<3x16x4xbf16, #tpu.memory_space<vmem>>, %arg6: memref<1x4xf32, #tpu.memory_space<vmem>>, %arg7: memref<3x16x4xbf16, #tpu.memory_space<vmem>>, %arg8: memref<1x4xf32, #tpu.memory_space<vmem>>, %arg9: memref<1x8x16x4xf32, #tpu.memory_space<vmem>>, %arg10: memref<10x18x4xbf16, #tpu.memory_space<vmem>>) attributes {dimension_semantics = [#tpu.dimension_semantics<parallel>, #tpu.dimension_semantics<parallel>], iteration_bounds = array<i64: 2, 2>, scalar_prefetch = 0 : i64, scratch_operands = 1 : i64, tpu.core_type = #tpu.core_type<tc>, window_params = [{transform_indices = @transform_0, window_bounds = array<i64: 1, 8, 18, 4>}, {transform_indices = @transform_1, window_bounds = array<i64: 1, 4, 18, 4>}, {transform_indices = @transform_2, window_bounds = array<i64: 1, 8, 16, 4>}, {pipeline_mode = #tpu.pipeline_mode<synchronous>, transform_indices = @transform_3, window_bounds = array<i64: 3, 16, 4>}, {pipeline_mode = #tpu.pipeline_mode<synchronous>, transform_indices = @transform_4, window_bounds = array<i64: 1, 4>}, {pipeline_mode = #tpu.pipeline_mode<synchronous>, transform_indices = @transform_5, window_bounds = array<i64: 3, 16, 4>}, {pipeline_mode = #tpu.pipeline_mode<synchronous>, transform_indices = @transform_6, window_bounds = array<i64: 1, 4>}, {transform_indices = @transform_7, window_bounds = array<i64: 1, 8, 16, 4>}]} {
    %c0 = arith.constant 0 : index
    %c0_0 = arith.constant 0 : index
    %c0_1 = arith.constant 0 : index
    %c0_2 = arith.constant 0 : index
    %0 = vector.load %arg2[%c0, %c0_0, %c0_1, %c0_2] : memref<1x8x18x4xbf16, #tpu.memory_space<vmem>>, vector<1x8x18x4xbf16>
    %1 = vector.shape_cast %0 : vector<1x8x18x4xbf16> to vector<8x18x4xbf16>
    %c0_3 = arith.constant 0 : index
    %c0_4 = arith.constant 0 : index
    %c0_5 = arith.constant 0 : index
    %c0_6 = arith.constant 0 : index
    %2 = vector.load %arg3[%c0_3, %c0_4, %c0_5, %c0_6] : memref<1x4x18x4xbf16, #tpu.memory_space<vmem>>, vector<1x4x18x4xbf16>
    %3 = vector.shape_cast %2 : vector<1x4x18x4xbf16> to vector<4x18x4xbf16>
    %4 = tpu.concatenate %1, %3 in 0 : vector<8x18x4xbf16>, vector<4x18x4xbf16> -> vector<12x18x4xbf16>
    %cst = arith.constant 0.000000e+00 : f32
    %5 = vector.broadcast %cst : f32 to vector<160x4xf32>
    %6 = vector.extract_strided_slice %4 {offsets = [0, 0, 0], sizes = [10, 16, 4], strides = [1, 1, 1]} : vector<12x18x4xbf16> to vector<10x16x4xbf16>
    %7 = vector.extract_strided_slice %4 {offsets = [0, 1, 0], sizes = [10, 16, 4], strides = [1, 1, 1]} : vector<12x18x4xbf16> to vector<10x16x4xbf16>
    %8 = vector.extract_strided_slice %4 {offsets = [0, 2, 0], sizes = [10, 16, 4], strides = [1, 1, 1]} : vector<12x18x4xbf16> to vector<10x16x4xbf16>
    %cst_7 = arith.constant 0.000000e+00 : bf16
    %9 = vector.broadcast %cst_7 : bf16 to vector<10x16x4xbf16>
    %10 = tpu.concatenate %6, %7, %8, %9 in 2 : vector<10x16x4xbf16>, vector<10x16x4xbf16>, vector<10x16x4xbf16>, vector<10x16x4xbf16> -> vector<10x16x16xbf16>
    %11 = vector.shape_cast %10 : vector<10x16x16xbf16> to vector<160x16xbf16>
    %c0_8 = arith.constant 0 : index
    %c0_9 = arith.constant 0 : index
    %c0_10 = arith.constant 0 : index
    %12 = vector.load %arg5[%c0_8, %c0_9, %c0_10] : memref<3x16x4xbf16, #tpu.memory_space<vmem>>, vector<1x16x4xbf16>
    %13 = vector.shape_cast %12 : vector<1x16x4xbf16> to vector<16x4xbf16>
    %cst_11 = arith.constant dense<0.000000e+00> : vector<160x4xf32>
    %14 = tpu.matmul %11, %13, %cst_11 {dimension_numbers = #tpu.dot_dimension_numbers<[1], [0], [0], [1], [0, 0, 1, 1], [], []>} : vector<160x16xbf16>, vector<16x4xbf16>, vector<160x4xf32> -> vector<160x4xf32>
    %15 = arith.addf %5, %14 : vector<160x4xf32>
    %16 = vector.extract_strided_slice %4 {offsets = [1, 0, 0], sizes = [10, 16, 4], strides = [1, 1, 1]} : vector<12x18x4xbf16> to vector<10x16x4xbf16>
    %17 = vector.extract_strided_slice %4 {offsets = [1, 1, 0], sizes = [10, 16, 4], strides = [1, 1, 1]} : vector<12x18x4xbf16> to vector<10x16x4xbf16>
    %18 = vector.extract_strided_slice %4 {offsets = [1, 2, 0], sizes = [10, 16, 4], strides = [1, 1, 1]} : vector<12x18x4xbf16> to vector<10x16x4xbf16>
    %cst_12 = arith.constant 0.000000e+00 : bf16
    %19 = vector.broadcast %cst_12 : bf16 to vector<10x16x4xbf16>
    %20 = tpu.concatenate %16, %17, %18, %19 in 2 : vector<10x16x4xbf16>, vector<10x16x4xbf16>, vector<10x16x4xbf16>, vector<10x16x4xbf16> -> vector<10x16x16xbf16>
    %21 = vector.shape_cast %20 : vector<10x16x16xbf16> to vector<160x16xbf16>
    %c1 = arith.constant 1 : index
    %c0_13 = arith.constant 0 : index
    %c0_14 = arith.constant 0 : index
    %22 = vector.load %arg5[%c1, %c0_13, %c0_14] : memref<3x16x4xbf16, #tpu.memory_space<vmem>>, vector<1x16x4xbf16>
    %23 = vector.shape_cast %22 : vector<1x16x4xbf16> to vector<16x4xbf16>
    %cst_15 = arith.constant dense<0.000000e+00> : vector<160x4xf32>
    %24 = tpu.matmul %21, %23, %cst_15 {dimension_numbers = #tpu.dot_dimension_numbers<[1], [0], [0], [1], [0, 0, 1, 1], [], []>} : vector<160x16xbf16>, vector<16x4xbf16>, vector<160x4xf32> -> vector<160x4xf32>
    %25 = arith.addf %15, %24 : vector<160x4xf32>
    %26 = vector.extract_strided_slice %4 {offsets = [2, 0, 0], sizes = [10, 16, 4], strides = [1, 1, 1]} : vector<12x18x4xbf16> to vector<10x16x4xbf16>
    %27 = vector.extract_strided_slice %4 {offsets = [2, 1, 0], sizes = [10, 16, 4], strides = [1, 1, 1]} : vector<12x18x4xbf16> to vector<10x16x4xbf16>
    %28 = vector.extract_strided_slice %4 {offsets = [2, 2, 0], sizes = [10, 16, 4], strides = [1, 1, 1]} : vector<12x18x4xbf16> to vector<10x16x4xbf16>
    %cst_16 = arith.constant 0.000000e+00 : bf16
    %29 = vector.broadcast %cst_16 : bf16 to vector<10x16x4xbf16>
    %30 = tpu.concatenate %26, %27, %28, %29 in 2 : vector<10x16x4xbf16>, vector<10x16x4xbf16>, vector<10x16x4xbf16>, vector<10x16x4xbf16> -> vector<10x16x16xbf16>
    %31 = vector.shape_cast %30 : vector<10x16x16xbf16> to vector<160x16xbf16>
    %c2 = arith.constant 2 : index
    %c0_17 = arith.constant 0 : index
    %c0_18 = arith.constant 0 : index
    %32 = vector.load %arg5[%c2, %c0_17, %c0_18] : memref<3x16x4xbf16, #tpu.memory_space<vmem>>, vector<1x16x4xbf16>
    %33 = vector.shape_cast %32 : vector<1x16x4xbf16> to vector<16x4xbf16>
    %cst_19 = arith.constant dense<0.000000e+00> : vector<160x4xf32>
    %34 = tpu.matmul %31, %33, %cst_19 {dimension_numbers = #tpu.dot_dimension_numbers<[1], [0], [0], [1], [0, 0, 1, 1], [], []>} : vector<160x16xbf16>, vector<16x4xbf16>, vector<160x4xf32> -> vector<160x4xf32>
    %35 = arith.addf %25, %34 : vector<160x4xf32>
    %c0_20 = arith.constant 0 : index
    %c0_21 = arith.constant 0 : index
    %36 = vector.load %arg6[%c0_20, %c0_21] : memref<1x4xf32, #tpu.memory_space<vmem>>, vector<1x4xf32>
    %37 = vector.broadcast %36 : vector<1x4xf32> to vector<160x4xf32>
    %38 = arith.addf %35, %37 : vector<160x4xf32>
    %cst_22 = arith.constant 0.000000e+00 : f32
    %39 = vector.broadcast %cst_22 : f32 to vector<160x4xf32>
    %40 = arith.maximumf %38, %39 : vector<160x4xf32>
    %41 = arith.truncf %40 : vector<160x4xf32> to vector<160x4xbf16>
    %42 = vector.shape_cast %41 : vector<160x4xbf16> to vector<10x16x4xbf16>
    %cst_23 = arith.constant 0.000000e+00 : bf16
    %43 = vector.broadcast %cst_23 : bf16 to vector<10x1x4xbf16>
    %44 = tpu.concatenate %43, %42, %43 in 1 : vector<10x1x4xbf16>, vector<10x16x4xbf16>, vector<10x1x4xbf16> -> vector<10x18x4xbf16>
    %c0_24 = arith.constant 0 : index
    %c0_25 = arith.constant 0 : index
    %c0_26 = arith.constant 0 : index
    %45 = vector.load %arg10[%c0_24, %c0_25, %c0_26] : memref<10x18x4xbf16, #tpu.memory_space<vmem>>, vector<10x18x4xbf16>
    tpu.vector_store %arg10[%c0_24, %c0_25, %c0_26], %44 {strides = array<i32>} : memref<10x18x4xbf16, #tpu.memory_space<vmem>>, vector<10x18x4xbf16>,
    %c0_i32 = arith.constant 0 : i32
    %46 = arith.cmpi eq, %arg1, %c0_i32 : i32
    %47 = arith.extui %46 : i1 to i32
    %c0_i32_27 = arith.constant 0 : i32
    %48 = arith.cmpi ne, %47, %c0_i32_27 : i32
    scf.if %48 {
      %cst_58 = arith.constant 0.000000e+00 : bf16
      %93 = vector.broadcast %cst_58 : bf16 to vector<1x18x4xbf16>
      %c0_59 = arith.constant 0 : index
      %c0_60 = arith.constant 0 : index
      %c0_61 = arith.constant 0 : index
      %94 = vector.load %arg10[%c0_59, %c0_60, %c0_61] : memref<10x18x4xbf16, #tpu.memory_space<vmem>>, vector<1x18x4xbf16>
      tpu.vector_store %arg10[%c0_59, %c0_60, %c0_61], %93 {strides = array<i32>} : memref<10x18x4xbf16, #tpu.memory_space<vmem>>, vector<1x18x4xbf16>,
    } else {
    }
    %c1_i32 = arith.constant 1 : i32
    %49 = arith.cmpi eq, %arg1, %c1_i32 : i32
    %50 = arith.extui %49 : i1 to i32
    %c0_i32_28 = arith.constant 0 : i32
    %51 = arith.cmpi ne, %50, %c0_i32_28 : i32
    scf.if %51 {
      %cst_58 = arith.constant 0.000000e+00 : bf16
      %93 = vector.broadcast %cst_58 : bf16 to vector<1x18x4xbf16>
      %c9 = arith.constant 9 : index
      %c0_59 = arith.constant 0 : index
      %c0_60 = arith.constant 0 : index
      %94 = vector.load %arg10[%c9, %c0_59, %c0_60] : memref<10x18x4xbf16, #tpu.memory_space<vmem>>, vector<1x18x4xbf16>
      tpu.vector_store %arg10[%c9, %c0_59, %c0_60], %93 {strides = array<i32>} : memref<10x18x4xbf16, #tpu.memory_space<vmem>>, vector<1x18x4xbf16>,
    } else {
    }
    %c0_29 = arith.constant 0 : index
    %c0_30 = arith.constant 0 : index
    %c0_31 = arith.constant 0 : index
    %52 = vector.load %arg10[%c0_29, %c0_30, %c0_31] : memref<10x18x4xbf16, #tpu.memory_space<vmem>>, vector<10x18x4xbf16>
    %cst_32 = arith.constant 0.000000e+00 : f32
    %53 = vector.broadcast %cst_32 : f32 to vector<128x4xf32>
    %54 = vector.extract_strided_slice %52 {offsets = [0, 0, 0], sizes = [8, 16, 4], strides = [1, 1, 1]} : vector<10x18x4xbf16> to vector<8x16x4xbf16>
    %55 = vector.extract_strided_slice %52 {offsets = [0, 1, 0], sizes = [8, 16, 4], strides = [1, 1, 1]} : vector<10x18x4xbf16> to vector<8x16x4xbf16>
    %56 = vector.extract_strided_slice %52 {offsets = [0, 2, 0], sizes = [8, 16, 4], strides = [1, 1, 1]} : vector<10x18x4xbf16> to vector<8x16x4xbf16>
    %cst_33 = arith.constant 0.000000e+00 : bf16
    %57 = vector.broadcast %cst_33 : bf16 to vector<8x16x4xbf16>
    %58 = tpu.concatenate %54, %55, %56, %57 in 2 : vector<8x16x4xbf16>, vector<8x16x4xbf16>, vector<8x16x4xbf16>, vector<8x16x4xbf16> -> vector<8x16x16xbf16>
    %59 = vector.shape_cast %58 : vector<8x16x16xbf16> to vector<128x16xbf16>
    %c0_34 = arith.constant 0 : index
    %c0_35 = arith.constant 0 : index
    %c0_36 = arith.constant 0 : index
    %60 = vector.load %arg7[%c0_34, %c0_35, %c0_36] : memref<3x16x4xbf16, #tpu.memory_space<vmem>>, vector<1x16x4xbf16>
    %61 = vector.shape_cast %60 : vector<1x16x4xbf16> to vector<16x4xbf16>
    %cst_37 = arith.constant dense<0.000000e+00> : vector<128x4xf32>
    %62 = tpu.matmul %59, %61, %cst_37 {dimension_numbers = #tpu.dot_dimension_numbers<[1], [0], [0], [1], [0, 0, 1, 1], [], []>} : vector<128x16xbf16>, vector<16x4xbf16>, vector<128x4xf32> -> vector<128x4xf32>
    %63 = arith.addf %53, %62 : vector<128x4xf32>
    %64 = vector.extract_strided_slice %52 {offsets = [1, 0, 0], sizes = [8, 16, 4], strides = [1, 1, 1]} : vector<10x18x4xbf16> to vector<8x16x4xbf16>
    %65 = vector.extract_strided_slice %52 {offsets = [1, 1, 0], sizes = [8, 16, 4], strides = [1, 1, 1]} : vector<10x18x4xbf16> to vector<8x16x4xbf16>
    %66 = vector.extract_strided_slice %52 {offsets = [1, 2, 0], sizes = [8, 16, 4], strides = [1, 1, 1]} : vector<10x18x4xbf16> to vector<8x16x4xbf16>
    %cst_38 = arith.constant 0.000000e+00 : bf16
    %67 = vector.broadcast %cst_38 : bf16 to vector<8x16x4xbf16>
    %68 = tpu.concatenate %64, %65, %66, %67 in 2 : vector<8x16x4xbf16>, vector<8x16x4xbf16>, vector<8x16x4xbf16>, vector<8x16x4xbf16> -> vector<8x16x16xbf16>
    %69 = vector.shape_cast %68 : vector<8x16x16xbf16> to vector<128x16xbf16>
    %c1_39 = arith.constant 1 : index
    %c0_40 = arith.constant 0 : index
    %c0_41 = arith.constant 0 : index
    %70 = vector.load %arg7[%c1_39, %c0_40, %c0_41] : memref<3x16x4xbf16, #tpu.memory_space<vmem>>, vector<1x16x4xbf16>
    %71 = vector.shape_cast %70 : vector<1x16x4xbf16> to vector<16x4xbf16>
    %cst_42 = arith.constant dense<0.000000e+00> : vector<128x4xf32>
    %72 = tpu.matmul %69, %71, %cst_42 {dimension_numbers = #tpu.dot_dimension_numbers<[1], [0], [0], [1], [0, 0, 1, 1], [], []>} : vector<128x16xbf16>, vector<16x4xbf16>, vector<128x4xf32> -> vector<128x4xf32>
    %73 = arith.addf %63, %72 : vector<128x4xf32>
    %74 = vector.extract_strided_slice %52 {offsets = [2, 0, 0], sizes = [8, 16, 4], strides = [1, 1, 1]} : vector<10x18x4xbf16> to vector<8x16x4xbf16>
    %75 = vector.extract_strided_slice %52 {offsets = [2, 1, 0], sizes = [8, 16, 4], strides = [1, 1, 1]} : vector<10x18x4xbf16> to vector<8x16x4xbf16>
    %76 = vector.extract_strided_slice %52 {offsets = [2, 2, 0], sizes = [8, 16, 4], strides = [1, 1, 1]} : vector<10x18x4xbf16> to vector<8x16x4xbf16>
    %cst_43 = arith.constant 0.000000e+00 : bf16
    %77 = vector.broadcast %cst_43 : bf16 to vector<8x16x4xbf16>
    %78 = tpu.concatenate %74, %75, %76, %77 in 2 : vector<8x16x4xbf16>, vector<8x16x4xbf16>, vector<8x16x4xbf16>, vector<8x16x4xbf16> -> vector<8x16x16xbf16>
    %79 = vector.shape_cast %78 : vector<8x16x16xbf16> to vector<128x16xbf16>
    %c2_44 = arith.constant 2 : index
    %c0_45 = arith.constant 0 : index
    %c0_46 = arith.constant 0 : index
    %80 = vector.load %arg7[%c2_44, %c0_45, %c0_46] : memref<3x16x4xbf16, #tpu.memory_space<vmem>>, vector<1x16x4xbf16>
    %81 = vector.shape_cast %80 : vector<1x16x4xbf16> to vector<16x4xbf16>
    %cst_47 = arith.constant dense<0.000000e+00> : vector<128x4xf32>
    %82 = tpu.matmul %79, %81, %cst_47 {dimension_numbers = #tpu.dot_dimension_numbers<[1], [0], [0], [1], [0, 0, 1, 1], [], []>} : vector<128x16xbf16>, vector<16x4xbf16>, vector<128x4xf32> -> vector<128x4xf32>
    %83 = arith.addf %73, %82 : vector<128x4xf32>
    %c0_48 = arith.constant 0 : index
    %c0_49 = arith.constant 0 : index
    %84 = vector.load %arg8[%c0_48, %c0_49] : memref<1x4xf32, #tpu.memory_space<vmem>>, vector<1x4xf32>
    %85 = vector.broadcast %84 : vector<1x4xf32> to vector<128x4xf32>
    %86 = arith.addf %83, %85 : vector<128x4xf32>
    %c0_50 = arith.constant 0 : index
    %c0_51 = arith.constant 0 : index
    %c0_52 = arith.constant 0 : index
    %c0_53 = arith.constant 0 : index
    %87 = vector.load %arg4[%c0_50, %c0_51, %c0_52, %c0_53] : memref<1x8x16x4xf32, #tpu.memory_space<vmem>>, vector<1x8x16x4xf32>
    %88 = vector.shape_cast %87 : vector<1x8x16x4xf32> to vector<8x16x4xf32>
    %89 = vector.shape_cast %88 : vector<8x16x4xf32> to vector<128x4xf32>
    %90 = arith.addf %89, %86 : vector<128x4xf32>
    %91 = vector.shape_cast %90 : vector<128x4xf32> to vector<1x8x16x4xf32>
    %c0_54 = arith.constant 0 : index
    %c0_55 = arith.constant 0 : index
    %c0_56 = arith.constant 0 : index
    %c0_57 = arith.constant 0 : index
    %92 = vector.load %arg9[%c0_54, %c0_55, %c0_56, %c0_57] : memref<1x8x16x4xf32, #tpu.memory_space<vmem>>, vector<1x8x16x4xf32>
    tpu.vector_store %arg9[%c0_54, %c0_55, %c0_56, %c0_57], %91 {strides = array<i32>} : memref<1x8x16x4xf32, #tpu.memory_space<vmem>>, vector<1x8x16x4xf32>,
    return
  }
  func.func @transform_0(%arg0: i32, %arg1: i32) -> (i32, i32, i32, i32) {
    %c0_i32 = arith.constant 0 : i32
    %c0_i32_0 = arith.constant 0 : i32
    %c0_i32_1 = arith.constant 0 : i32
    return %arg0, %arg1, %c0_i32, %c0_i32_0 : i32, i32, i32, i32
  }
  func.func @transform_1(%arg0: i32, %arg1: i32) -> (i32, i32, i32, i32) {
    %c1_i32 = arith.constant 1 : i32
    %0 = arith.addi %arg1, %c1_i32 : i32
    %c2_i32 = arith.constant 2 : i32
    %1 = arith.muli %0, %c2_i32 : i32
    %c0_i32 = arith.constant 0 : i32
    %c0_i32_0 = arith.constant 0 : i32
    %c0_i32_1 = arith.constant 0 : i32
    return %arg0, %1, %c0_i32, %c0_i32_0 : i32, i32, i32, i32
  }
  func.func @transform_2(%arg0: i32, %arg1: i32) -> (i32, i32, i32, i32) {
    %c0_i32 = arith.constant 0 : i32
    %c0_i32_0 = arith.constant 0 : i32
    %c0_i32_1 = arith.constant 0 : i32
    return %arg0, %arg1, %c0_i32, %c0_i32_0 : i32, i32, i32, i32
  }
  func.func @transform_3(%arg0: i32, %arg1: i32) -> (i32, i32, i32) {
    %c0_i32 = arith.constant 0 : i32
    %c0_i32_0 = arith.constant 0 : i32
    %c0_i32_1 = arith.constant 0 : i32
    %c0_i32_2 = arith.constant 0 : i32
    return %c0_i32, %c0_i32_0, %c0_i32_1 : i32, i32, i32
  }
  func.func @transform_4(%arg0: i32, %arg1: i32) -> (i32, i32) {
    %c0_i32 = arith.constant 0 : i32
    %c0_i32_0 = arith.constant 0 : i32
    %c0_i32_1 = arith.constant 0 : i32
    return %c0_i32, %c0_i32_0 : i32, i32
  }
  func.func @transform_5(%arg0: i32, %arg1: i32) -> (i32, i32, i32) {
    %c0_i32 = arith.constant 0 : i32
    %c0_i32_0 = arith.constant 0 : i32
    %c0_i32_1 = arith.constant 0 : i32
    %c0_i32_2 = arith.constant 0 : i32
    return %c0_i32, %c0_i32_0, %c0_i32_1 : i32, i32, i32
  }
  func.func @transform_6(%arg0: i32, %arg1: i32) -> (i32, i32) {
    %c0_i32 = arith.constant 0 : i32
    %c0_i32_0 = arith.constant 0 : i32
    %c0_i32_1 = arith.constant 0 : i32
    return %c0_i32, %c0_i32_0 : i32, i32
  }
  func.func @transform_7(%arg0: i32, %arg1: i32) -> (i32, i32, i32, i32) {
    %c0_i32 = arith.constant 0 : i32
    %c0_i32_0 = arith.constant 0 : i32
    %c0_i32_1 = arith.constant 0 : i32
    return %arg0, %arg1, %c0_i32, %c0_i32_0 : i32, i32, i32, i32
  }
}

</mosaic_0001>

<llo_original>
// kernel: tpu_custom_call.1
$region0: #{tpu_custom_call.1}
  #allocation0 [shape = 'u32[]', space=smem, size = 0x4, offset = 0x4, fixed_abs, tag = 'smem constant byte address 0x4 - core index']
  #allocation1 [shape = 'u32[144,128]{1,0:T(1,128)}', space=vmem, size = 0x12000, scoped, tag = 'internal scratch']
  #allocation2 [shape = 'bf16[10,18,4]{2,1,0:T(8,128)(2,1)}', space=vmem, size = 0xf000, scoped, tag = 'scratch operand']
  %s0 = inlined_call_operand.vmem [shape: bf16[2,20,18,4], index: 0, kind: input, shape index: {}]
  %s1 = inlined_call_operand.vmem [shape: bf16[2,20,18,4], index: 1, kind: input, shape index: {}]
  %s2 = inlined_call_operand.vmem [shape: f32[2,16,16,4], index: 2, kind: input, shape index: {}]
  %s3 = inlined_call_operand.vmem [shape: bf16[3,16,4], index: 3, kind: input, shape index: {}]
  %s4 = inlined_call_operand.vmem [shape: f32[1,4], index: 4, kind: input, shape index: {}]
  %s5 = inlined_call_operand.vmem [shape: bf16[3,16,4], index: 5, kind: input, shape index: {}]
  %s6 = inlined_call_operand.vmem [shape: f32[1,4], index: 6, kind: input, shape index: {}]
  %s7 = inlined_call_operand.vmem [shape: f32[2,16,16,4], index: 7, kind: output, shape index: {}]
  %s8 = sld [smem:[#allocation0]]
  $region69: #{tpu_custom_call.1} parent=0
    _
  %s10 = ssub.s32 1, %s8
  %s11 = scalar_select 0, %s10, %s8
  loop: start=0, step=1, limit=6
  $region2: #{tpu_custom_call.1} parent=0 // loop_pre_header
    _
  $region3: #{tpu_custom_call.1} parent=0 // loop_header
    %s13 = sphi 0, %s17
    %p14 = scmp.ge.s32.totalorder %s13, 6
    %s20 = sphi 0, %s32
    %s21 = sphi 0, %s28
    %s22 = sphi 0, %s20
    %s23 = sphi 0, %s21
    %s24 = sphi 0, %s22
    %s25 = sphi 0, %s23
    %s37 = sphi 0, %s39
    %s40 = sphi 0, %s37
    %s41 = sphi 0, %s40
    %s57 = sphi 0, %s41
    %s69 = sphi 0, %s71
    %s72 = sphi 0, %s69
    %s73 = sphi 0, %s72
    %s89 = sphi 0, %s73
    %s97 = sphi 0, %s99
    %s100 = sphi 0, %s97
    %s101 = sphi 0, %s100
    %s117 = sphi 0, %s101
    %s121 = sphi 0, %s121
    %s123 = sphi 0, %s121
    %s124 = sphi 0, %s123
    %s138 = sphi 0, %s124
    %s142 = sphi 0, %s142
    %s144 = sphi 0, %s142
    %s145 = sphi 0, %s144
    %s159 = sphi 0, %s145
    %s163 = sphi 0, %s163
    %s165 = sphi 0, %s163
    %s166 = sphi 0, %s165
    %s180 = sphi 0, %s166
    %s184 = sphi 0, %s184
    %s186 = sphi 0, %s184
    %s187 = sphi 0, %s186
    %s201 = sphi 0, %s187
    %s209 = sphi 0, %s211
    %s212 = sphi 0, %s209
    %s213 = sphi 0, %s212
    %s229 = sphi 0, %s213
  $region4: #{tpu_custom_call.1} parent=0 // loop_header_branch
    %16 = sbr.rel (%p14) target = $region8
  $region5: #{tpu_custom_call.1} parent=0 // loop_body
    %s18 = ssub.s32 %s13, 1
    %s19 = ssub.s32 %s13, 2
    %s26 = sadd.s32 1, %s21
    %p27 = scmp.ge.s32.totalorder %s26, 2
    %s28 = scalar_select %p27, 0, %s26
    %s29 = sadd.s32 1, %s20
    %s30 = scalar_select %p27, %s29, %s20
    %p31 = scmp.ge.s32.totalorder %s30, 2
    %s32 = scalar_select %p31, 0, %s30
    %s33 = ssub.s32 %s20, %s32
    %s34 = ssub.s32 %s21, %s28
    %s35 = sor.u32 %s33, %s34
    %p36 = scmp.eq.s32.totalorder %s35, 0
    %s38 = sadd.s32 %s37, 1
    %s39 = scalar_select %p36, %s37, %s38
    %p42 = pneg %p36
    %p43 = scmp.eq.s32.totalorder %s13, 3
    %p44 = por %p42, %p43
    %p45 = scmp.ne.s32.totalorder %s37, %s40
    %p46 = scmp.eq.s32.totalorder %s13, 0
    %p47 = por %p45, %p46
    %p48 = scmp.ne.s32.totalorder %s37, %s40
    %p49 = scmp.eq.s32.totalorder %s18, 3
    %p50 = por %p48, %p49
    %p51 = scmp.ne.s32.totalorder %s40, %s41
    %p52 = scmp.eq.s32.totalorder %s18, 0
    %p53 = por %p51, %p52
    %p54 = scmp.ne.s32.totalorder %s40, %s41
    %p55 = scmp.eq.s32.totalorder %s19, 3
    %p56 = por %p54, %p55
    %p58 = scmp.ne.s32.totalorder %s41, %s57
    %p59 = scmp.eq.s32.totalorder %s19, 0
    %p60 = por %p58, %p59
    %s61 = sadd.s32 %s21, 1
    %s62 = smul.u32 %s61, 2
    %s63 = sadd.s32 %s28, 1
    %s64 = smul.u32 %s63, 2
    %s65 = ssub.s32 %s20, %s32
    %s66 = ssub.s32 %s62, %s64
    %s67 = sor.u32 %s65, %s66
    %p68 = scmp.eq.s32.totalorder %s67, 0
    %s70 = sadd.s32 %s69, 1
    %s71 = scalar_select %p68, %s69, %s70
    %p74 = pneg %p68
    %p75 = scmp.eq.s32.totalorder %s13, 3
    %p76 = por %p74, %p75
    %p77 = scmp.ne.s32.totalorder %s69, %s72
    %p78 = scmp.eq.s32.totalorder %s13, 0
    %p79 = por %p77, %p78
    %p80 = scmp.ne.s32.totalorder %s69, %s72
    %p81 = scmp.eq.s32.totalorder %s18, 3
    %p82 = por %p80, %p81
    %p83 = scmp.ne.s32.totalorder %s72, %s73
    %p84 = scmp.eq.s32.totalorder %s18, 0
    %p85 = por %p83, %p84
    %p86 = scmp.ne.s32.totalorder %s72, %s73
    %p87 = scmp.eq.s32.totalorder %s19, 3
    %p88 = por %p86, %p87
    %p90 = scmp.ne.s32.totalorder %s73, %s89
    %p91 = scmp.eq.s32.totalorder %s19, 0
    %p92 = por %p90, %p91
    %s93 = ssub.s32 %s20, %s32
    %s94 = ssub.s32 %s21, %s28
    %s95 = sor.u32 %s93, %s94
    %p96 = scmp.eq.s32.totalorder %s95, 0
    %s98 = sadd.s32 %s97, 1
    %s99 = scalar_select %p96, %s97, %s98
    %p102 = pneg %p96
    %p103 = scmp.eq.s32.totalorder %s13, 3
    %p104 = por %p102, %p103
    %p105 = scmp.ne.s32.totalorder %s97, %s100
    %p106 = scmp.eq.s32.totalorder %s13, 0
    %p107 = por %p105, %p106
    %p108 = scmp.ne.s32.totalorder %s97, %s100
    %p109 = scmp.eq.s32.totalorder %s18, 3
    %p110 = por %p108, %p109
    %p111 = scmp.ne.s32.totalorder %s100, %s101
    %p112 = scmp.eq.s32.totalorder %s18, 0
    %p113 = por %p111, %p112
    %p114 = scmp.ne.s32.totalorder %s100, %s101
    %p115 = scmp.eq.s32.totalorder %s19, 3
    %p116 = por %p114, %p115
    %p118 = scmp.ne.s32.totalorder %s101, %s117
    %p119 = scmp.eq.s32.totalorder %s19, 0
    %p120 = por %p118, %p119
    %s122 = sadd.s32 %s121, 1
    %p125 = scmp.eq.s32.totalorder %s13, 3
    %p126 = scmp.ne.s32.totalorder %s121, %s123
    %p127 = scmp.eq.s32.totalorder %s13, 0
    %p128 = por %p126, %p127
    %p129 = scmp.ne.s32.totalorder %s121, %s123
    %p130 = scmp.eq.s32.totalorder %s18, 3
    %p131 = por %p129, %p130
    %p132 = scmp.ne.s32.totalorder %s123, %s124
    %p133 = scmp.eq.s32.totalorder %s18, 0
    %p134 = por %p132, %p133
    %p135 = scmp.ne.s32.totalorder %s123, %s124
    %p136 = scmp.eq.s32.totalorder %s19, 3
    %p137 = por %p135, %p136
    %p139 = scmp.ne.s32.totalorder %s124, %s138
    %p140 = scmp.eq.s32.totalorder %s19, 0
    %p141 = por %p139, %p140
    %s143 = sadd.s32 %s142, 1
    %p146 = scmp.eq.s32.totalorder %s13, 3
    %p147 = scmp.ne.s32.totalorder %s142, %s144
    %p148 = scmp.eq.s32.totalorder %s13, 0
    %p149 = por %p147, %p148
    %p150 = scmp.ne.s32.totalorder %s142, %s144
    %p151 = scmp.eq.s32.totalorder %s18, 3
    %p152 = por %p150, %p151
    %p153 = scmp.ne.s32.totalorder %s144, %s145
    %p154 = scmp.eq.s32.totalorder %s18, 0
    %p155 = por %p153, %p154
    %p156 = scmp.ne.s32.totalorder %s144, %s145
    %p157 = scmp.eq.s32.totalorder %s19, 3
    %p158 = por %p156, %p157
    %p160 = scmp.ne.s32.totalorder %s145, %s159
    %p161 = scmp.eq.s32.totalorder %s19, 0
    %p162 = por %p160, %p161
    %s164 = sadd.s32 %s163, 1
    %p167 = scmp.eq.s32.totalorder %s13, 3
    %p168 = scmp.ne.s32.totalorder %s163, %s165
    %p169 = scmp.eq.s32.totalorder %s13, 0
    %p170 = por %p168, %p169
    %p171 = scmp.ne.s32.totalorder %s163, %s165
    %p172 = scmp.eq.s32.totalorder %s18, 3
    %p173 = por %p171, %p172
    %p174 = scmp.ne.s32.totalorder %s165, %s166
    %p175 = scmp.eq.s32.totalorder %s18, 0
    %p176 = por %p174, %p175
    %p177 = scmp.ne.s32.totalorder %s165, %s166
    %p178 = scmp.eq.s32.totalorder %s19, 3
    %p179 = por %p177, %p178
    %p181 = scmp.ne.s32.totalorder %s166, %s180
    %p182 = scmp.eq.s32.totalorder %s19, 0
    %p183 = por %p181, %p182
    %s185 = sadd.s32 %s184, 1
    %p188 = scmp.eq.s32.totalorder %s13, 3
    %p189 = scmp.ne.s32.totalorder %s184, %s186
    %p190 = scmp.eq.s32.totalorder %s13, 0
    %p191 = por %p189, %p190
    %p192 = scmp.ne.s32.totalorder %s184, %s186
    %p193 = scmp.eq.s32.totalorder %s18, 3
    %p194 = por %p192, %p193
    %p195 = scmp.ne.s32.totalorder %s186, %s187
    %p196 = scmp.eq.s32.totalorder %s18, 0
    %p197 = por %p195, %p196
    %p198 = scmp.ne.s32.totalorder %s186, %s187
    %p199 = scmp.eq.s32.totalorder %s19, 3
    %p200 = por %p198, %p199
    %p202 = scmp.ne.s32.totalorder %s187, %s201
    %p203 = scmp.eq.s32.totalorder %s19, 0
    %p204 = por %p202, %p203
    %s205 = ssub.s32 %s20, %s32
    %s206 = ssub.s32 %s21, %s28
    %s207 = sor.u32 %s205, %s206
    %p208 = scmp.eq.s32.totalorder %s207, 0
    %s210 = sadd.s32 %s209, 1
    %s211 = scalar_select %p208, %s209, %s210
    %p214 = pneg %p208
    %p215 = scmp.eq.s32.totalorder %s13, 3
    %p216 = por %p214, %p215
    %p217 = scmp.ne.s32.totalorder %s209, %s212
    %p218 = scmp.eq.s32.totalorder %s13, 0
    %p219 = por %p217, %p218
    %p220 = scmp.ne.s32.totalorder %s209, %s212
    %p221 = scmp.eq.s32.totalorder %s18, 3
    %p222 = por %p220, %p221
    %p223 = scmp.ne.s32.totalorder %s212, %s213
    %p224 = scmp.eq.s32.totalorder %s18, 0
    %p225 = por %p223, %p224
    %p226 = scmp.ne.s32.totalorder %s212, %s213
    %p227 = scmp.eq.s32.totalorder %s19, 3
    %p228 = por %p226, %p227
    %p230 = scmp.ne.s32.totalorder %s213, %s229
    %p231 = scmp.eq.s32.totalorder %s19, 0
    %p232 = por %p230, %p231
    %p233 = scmp.le.s32.totalorder 1, %s13
    %p234 = scmp.lt.s32.totalorder %s13, 5
    %p235 = pnand %p233, %p234
    %p236 = pneg %p235
    // Predicated region
    $region9: #{tpu_custom_call.1} parent=5 // pred_check
      _
    $region10: #{tpu_custom_call.1} parent=5 // pred_check_branch
      %238 = sbr.rel (%p235) target = $region12
    $region11: #{tpu_custom_call.1} parent=5 // pred_region
      %s239 = ssub.s32 %s13, 1
      // Predicated region
      $region13: #{tpu_custom_call.1} parent=11 // pred_check
        %p240 = pneg %p134
      $region14: #{tpu_custom_call.1} parent=11 // pred_check_branch
        %242 = sbr.rel (%p240) target = $region16
      $region15: #{tpu_custom_call.1} parent=11 // pred_region
        _
      $region16: #{tpu_custom_call.1} parent=11 // pred_fallthru
        _
      // Predicated region
      $region17: #{tpu_custom_call.1} parent=11 // pred_check
        %p243 = pneg %p155
      $region18: #{tpu_custom_call.1} parent=11 // pred_check_branch
        %245 = sbr.rel (%p243) target = $region20
      $region19: #{tpu_custom_call.1} parent=11 // pred_region
        _
      $region20: #{tpu_custom_call.1} parent=11 // pred_fallthru
        _
      // Predicated region
      $region21: #{tpu_custom_call.1} parent=11 // pred_check
        %p246 = pneg %p176
      $region22: #{tpu_custom_call.1} parent=11 // pred_check_branch
        %248 = sbr.rel (%p246) target = $region24
      $region23: #{tpu_custom_call.1} parent=11 // pred_region
        _
      $region24: #{tpu_custom_call.1} parent=11 // pred_fallthru
        _
      // Predicated region
      $region25: #{tpu_custom_call.1} parent=11 // pred_check
        %p249 = pneg %p197
      $region26: #{tpu_custom_call.1} parent=11 // pred_check_branch
        %251 = sbr.rel (%p249) target = $region28
      $region27: #{tpu_custom_call.1} parent=11 // pred_region
        _
      $region28: #{tpu_custom_call.1} parent=11 // pred_fallthru
        _
    $region12: #{tpu_custom_call.1} parent=5 // pred_fallthru
      _
    %p252 = scmp.lt.s32.totalorder %s13, 4
    // Predicated region
    $region29: #{tpu_custom_call.1} parent=5 // pred_check
      %p253 = pneg %p252
    $region30: #{tpu_custom_call.1} parent=5 // pred_check_branch
      %255 = sbr.rel (%p253) target = $region32
    $region31: #{tpu_custom_call.1} parent=5 // pred_region
      // Predicated region
      $region33: #{tpu_custom_call.1} parent=31 // pred_check
        %p256 = pneg %p47
      $region34: #{tpu_custom_call.1} parent=31 // pred_check_branch
        %258 = sbr.rel (%p256) target = $region36
      $region35: #{tpu_custom_call.1} parent=31 // pred_region
        %s259 = smul.u32 8, %s21
        %s260 = ssub.s32 20, %s259
        %p261 = scmp.lt.s32.totalorder %s260, 8
        %s262 = scalar_select %p261, %s260, 8
        %s263 = smul.u32 64, %s262
        %s264 = smul.u32 %s263, 3
        %p265 = scmp.lt.s32.totalorder %s20, 1
        %s266 = scalar_select %p265, %s20, 1
        %p267 = scmp.lt.s32.totalorder %s259, 19
        %s268 = scalar_select %p267, %s259, 19
        %s269 = smul.addr %s268, 3
        %s270 = smul.addr %s266, 60
        %s271 = sadd.s32 %s269, %s270
        %s272 = smul.addr %s271, 4
        %s273 = scalar_lea.vmem %s0, %s272
        %s274 = smul.u32 8, %s21
        %s275 = ssub.s32 20, %s274
        %p276 = scmp.lt.s32.totalorder %s275, 8
        %s277 = scalar_select %p276, %s275, 8
        %s278 = smul.u32 64, %s277
        %s279 = smul.u32 %s278, 3
      $region36: #{tpu_custom_call.1} parent=31 // pred_fallthru
        _
      // Predicated region
      $region37: #{tpu_custom_call.1} parent=31 // pred_check
        %p280 = pneg %p79
      $region38: #{tpu_custom_call.1} parent=31 // pred_check_branch
        %282 = sbr.rel (%p280) target = $region40
      $region39: #{tpu_custom_call.1} parent=31 // pred_region
        %s283 = sadd.s32 %s21, 1
        %s284 = smul.u32 %s283, 2
        %s285 = smul.u32 4, %s284
        %p286 = scmp.lt.s32.totalorder %s20, 1
        %s287 = scalar_select %p286, %s20, 1
        %p288 = scmp.lt.s32.totalorder %s285, 19
        %s289 = scalar_select %p288, %s285, 19
        %s290 = smul.addr %s289, 3
        %s291 = smul.addr %s287, 60
        %s292 = sadd.s32 %s290, %s291
        %s293 = smul.addr %s292, 4
        %s294 = scalar_lea.vmem %s1, %s293
        %s295 = sadd.s32 %s21, 1
        %s296 = smul.u32 %s295, 2
        %s297 = smul.u32 4, %s296
      $region40: #{tpu_custom_call.1} parent=31 // pred_fallthru
        _
      // Predicated region
      $region41: #{tpu_custom_call.1} parent=31 // pred_check
        %p298 = pneg %p107
      $region42: #{tpu_custom_call.1} parent=31 // pred_check_branch
        %300 = sbr.rel (%p298) target = $region44
      $region43: #{tpu_custom_call.1} parent=31 // pred_region
        %s301 = smul.u32 8, %s21
        %p302 = scmp.lt.s32.totalorder %s20, 1
        %s303 = scalar_select %p302, %s20, 1
        %p304 = scmp.lt.s32.totalorder %s301, 15
        %s305 = scalar_select %p304, %s301, 15
        %s306 = smul.addr %s305, 2
        %s307 = smul.addr %s303, 32
        %s308 = sadd.s32 %s306, %s307
        %s309 = smul.addr %s308, 8
        %s310 = scalar_lea.vmem %s2, %s309
        %s311 = smul.u32 8, %s21
      $region44: #{tpu_custom_call.1} parent=31 // pred_fallthru
        _
    $region32: #{tpu_custom_call.1} parent=5 // pred_fallthru
      _
    %p312 = scmp.le.s32.totalorder 1, %s13
    %p313 = scmp.lt.s32.totalorder %s13, 5
    %p314 = pnand %p312, %p313
    %p315 = pneg %p314
    // Predicated region
    $region45: #{tpu_custom_call.1} parent=5 // pred_check
      _
    $region46: #{tpu_custom_call.1} parent=5 // pred_check_branch
      %317 = sbr.rel (%p314) target = $region48
    $region47: #{tpu_custom_call.1} parent=5 // pred_region
      %s318 = ssub.s32 %s13, 1
      %s319 = smul.u32 8, %s23
      %s320 = ssub.s32 20, %s319
      %p321 = scmp.lt.s32.totalorder %s320, 8
      %s322 = scalar_select %p321, %s320, 8
      %s323 = smul.u32 64, %s322
      %s324 = smul.u32 %s323, 3
      %p325 = scmp.lt.s32.totalorder %s22, 1
      %s326 = scalar_select %p325, %s22, 1
      %p327 = scmp.lt.s32.totalorder %s319, 19
      %s328 = scalar_select %p327, %s319, 19
      %s329 = smul.addr %s328, 3
      %s330 = smul.addr %s326, 60
      %s331 = sadd.s32 %s329, %s330
      %s332 = smul.addr %s331, 4
      %s333 = scalar_lea.vmem %s0, %s332
      %p334 = pneg %p53
      %p335 = pneg %p50
      %s336 = sadd.s32 %s23, 1
      %s337 = smul.u32 %s336, 2
      %s338 = smul.u32 4, %s337
      %p339 = scmp.lt.s32.totalorder %s22, 1
      %s340 = scalar_select %p339, %s22, 1
      %p341 = scmp.lt.s32.totalorder %s338, 19
      %s342 = scalar_select %p341, %s338, 19
      %s343 = smul.addr %s342, 3
      %s344 = smul.addr %s340, 60
      %s345 = sadd.s32 %s343, %s344
      %s346 = smul.addr %s345, 4
      %s347 = scalar_lea.vmem %s1, %s346
      %p348 = pneg %p85
      %p349 = pneg %p82
      %s350 = smul.u32 8, %s23
      %p351 = scmp.lt.s32.totalorder %s22, 1
      %s352 = scalar_select %p351, %s22, 1
      %p353 = scmp.lt.s32.totalorder %s350, 15
      %s354 = scalar_select %p353, %s350, 15
      %s355 = smul.addr %s354, 2
      %s356 = smul.addr %s352, 32
      %s357 = sadd.s32 %s355, %s356
      %s358 = smul.addr %s357, 8
      %s359 = scalar_lea.vmem %s2, %s358
      %p360 = pneg %p113
      %p361 = pneg %p110
      %p362 = pneg %p134
      %p363 = pneg %p131
      %p364 = pneg %p155
      %p365 = pneg %p152
      %p366 = pneg %p176
      %p367 = pneg %p173
      %p368 = pneg %p197
      %p369 = pneg %p194
      %p370 = pneg %p225
      %p371 = pneg %p222
      %s372 = smul.u32 8, %s23
      %p373 = scmp.lt.s32.totalorder %s22, 1
      %s374 = scalar_select %p373, %s22, 1
      %p375 = scmp.lt.s32.totalorder %s372, 15
      %s376 = scalar_select %p375, %s372, 15
      %s377 = smul.addr %s376, 2
      %s378 = smul.addr %s374, 32
      %s379 = sadd.s32 %s377, %s378
      %s380 = smul.addr %s379, 8
      %s381 = scalar_lea.vmem %s7, %s380
      %s382 = smul.u32 8, %s23
      %s383 = ssub.s32 20, %s382
      %p384 = scmp.lt.s32.totalorder %s383, 8
      %s385 = scalar_select %p384, %s383, 8
      %s386 = smul.u32 64, %s385
      %s387 = smul.u32 %s386, 3
      %p388 = scmp.lt.s32.totalorder %s22, 1
      %s389 = scalar_select %p388, %s22, 1
      %p390 = scmp.lt.s32.totalorder %s382, 19
      %s391 = scalar_select %p390, %s382, 19
      %s392 = smul.addr %s391, 3
      %s393 = smul.addr %s389, 60
      %s394 = sadd.s32 %s392, %s393
      %s395 = smul.addr %s394, 4
      %s396 = scalar_lea.vmem %s0, %s395
      %s397 = smul.u32 8, %s23
      %s398 = ssub.s32 20, %s397
      %p399 = scmp.lt.s32.totalorder %s398, 8
      %s400 = scalar_select %p399, %s398, 8
      %s401 = smul.u32 64, %s400
      %s402 = smul.u32 %s401, 3
      %s403 = sadd.s32 %s23, 1
      %s404 = smul.u32 %s403, 2
      %s405 = smul.u32 4, %s404
      %p406 = scmp.lt.s32.totalorder %s22, 1
      %s407 = scalar_select %p406, %s22, 1
      %p408 = scmp.lt.s32.totalorder %s405, 19
      %s409 = scalar_select %p408, %s405, 19
      %s410 = smul.addr %s409, 3
      %s411 = smul.addr %s407, 60
      %s412 = sadd.s32 %s410, %s411
      %s413 = smul.addr %s412, 4
      %s414 = scalar_lea.vmem %s1, %s413
      %s415 = sadd.s32 %s23, 1
      %s416 = smul.u32 %s415, 2
      %s417 = smul.u32 4, %s416
      %s418 = smul.u32 8, %s23
      %p419 = scmp.lt.s32.totalorder %s22, 1
      %s420 = scalar_select %p419, %s22, 1
      %p421 = scmp.lt.s32.totalorder %s418, 15
      %s422 = scalar_select %p421, %s418, 15
      %s423 = smul.addr %s422, 2
      %s424 = smul.addr %s420, 32
      %s425 = sadd.s32 %s423, %s424
      %s426 = smul.addr %s425, 8
      %s427 = scalar_lea.vmem %s2, %s426
      %s428 = smul.u32 8, %s23
      %s429 = smul.u32 8, %s23
      %p430 = scmp.lt.s32.totalorder %s22, 1
      %s431 = scalar_select %p430, %s22, 1
      %p432 = scmp.lt.s32.totalorder %s429, 15
      %s433 = scalar_select %p432, %s429, 15
      %s434 = smul.addr %s433, 2
      %s435 = smul.addr %s431, 32
      %s436 = sadd.s32 %s434, %s435
      %s437 = smul.addr %s436, 8
      %s438 = scalar_lea.vmem %s7, %s437
      %s439 = smul.u32 8, %s23
      %v441 = vld [vmem:[%s396] sm:$0xf]
      %v442 = vld [vmem:[%s396 + $0x4] sm:$0xf]
      %v443 = vld [vmem:[%s396 + $0x8] sm:$0x1]
      %v444 = vld [vmem:[%s396 + $0xc] sm:$0xf]
      %v445 = vld [vmem:[%s396 + $0x10] sm:$0xf]
      %v446 = vld [vmem:[%s396 + $0x14] sm:$0x1]
      %v447 = vld [vmem:[%s396 + $0x18] sm:$0xf]
      %v448 = vld [vmem:[%s396 + $0x1c] sm:$0xf]
      %v449 = vld [vmem:[%s396 + $0x20] sm:$0x1]
      %v450 = vld [vmem:[%s396 + $0x24] sm:$0xf]
      %v451 = vld [vmem:[%s396 + $0x28] sm:$0xf]
      %v452 = vld [vmem:[%s396 + $0x2c] sm:$0x1]
      %v453 = vld [vmem:[%s396 + $0x30] sm:$0xf]
      %v454 = vld [vmem:[%s396 + $0x34] sm:$0xf]
      %v455 = vld [vmem:[%s396 + $0x38] sm:$0x1]
      %v456 = vld [vmem:[%s396 + $0x3c] sm:$0xf]
      %v457 = vld [vmem:[%s396 + $0x40] sm:$0xf]
      %v458 = vld [vmem:[%s396 + $0x44] sm:$0x1]
      %v459 = vld [vmem:[%s396 + $0x48] sm:$0xf]
      %v460 = vld [vmem:[%s396 + $0x4c] sm:$0xf]
      %v461 = vld [vmem:[%s396 + $0x50] sm:$0x1]
      %v462 = vld [vmem:[%s396 + $0x54] sm:$0xf]
      %v463 = vld [vmem:[%s396 + $0x58] sm:$0xf]
      %v464 = vld [vmem:[%s396 + $0x5c] sm:$0x1]
      %v465 = vld [vmem:[%s414] sm:$0xf]
      %v466 = vld [vmem:[%s414 + $0x4] sm:$0xf]
      %v467 = vld [vmem:[%s414 + $0x8] sm:$0x1]
      %v468 = vld [vmem:[%s414 + $0xc] sm:$0xf]
      %v469 = vld [vmem:[%s414 + $0x10] sm:$0xf]
      %v470 = vld [vmem:[%s414 + $0x14] sm:$0x1]
      %v471 = vld [vmem:[%s414 + $0x18] sm:$0xf]
      %v472 = vld [vmem:[%s414 + $0x1c] sm:$0xf]
      %v473 = vld [vmem:[%s414 + $0x20] sm:$0x1]
      %v474 = vld [vmem:[%s414 + $0x24] sm:$0xf]
      %v475 = vld [vmem:[%s414 + $0x28] sm:$0xf]
      %v476 = vld [vmem:[%s414 + $0x2c] sm:$0x1]
      %v497 = vunpack.c.l.b16 %v441
      %v498 = vunpack.c.l.b16 %v442
      %v499 = vunpack.c.l.b16 %v444
      %v500 = vunpack.c.l.b16 %v445
      %v501 = vunpack.c.l.b16 %v447
      %v502 = vunpack.c.l.b16 %v448
      %v503 = vunpack.c.l.b16 %v450
      %v504 = vunpack.c.l.b16 %v451
      %v505 = vunpack.c.l.b16 %v453
      %v506 = vunpack.c.l.b16 %v454
      %v507 = vunpack.c.l.b16 %v456
      %v508 = vunpack.c.l.b16 %v457
      %v509 = vunpack.c.l.b16 %v459
      %v510 = vunpack.c.l.b16 %v460
      %v511 = vunpack.c.l.b16 %v462
      %v512 = vunpack.c.l.b16 %v463
      %v513 = vunpack.c.l.b16 %v465
      %v514 = vunpack.c.l.b16 %v466
      %v515 = vunpack.c.l.b16 %v468
      %v516 = vunpack.c.l.b16 %v469
      %v517 = vpack.c.b16 %v498, %v497
      %v518 = vpack.c.b16 %v500, %v499
      %v519 = vpack.c.b16 %v502, %v501
      %v520 = vpack.c.b16 %v504, %v503
      %v521 = vpack.c.b16 %v506, %v505
      %v522 = vpack.c.b16 %v508, %v507
      %v523 = vpack.c.b16 %v510, %v509
      %v524 = vpack.c.b16 %v512, %v511
      %v525 = vpack.c.b16 %v514, %v513
      %v526 = vpack.c.b16 %v516, %v515
      %v537 = vunpack.c.l.b16 %v443
      %v538 = vunpack.c.l.b16 %v446
      %v539 = vunpack.c.l.b16 %v449
      %v540 = vunpack.c.l.b16 %v452
      %v541 = vunpack.c.l.b16 %v455
      %v542 = vunpack.c.l.b16 %v458
      %v543 = vunpack.c.l.b16 %v461
      %v544 = vunpack.c.l.b16 %v464
      %v545 = vunpack.c.l.b16 %v467
      %v546 = vunpack.c.l.b16 %v470
      %v547 = vpack.c.b16 %v537, %v537
      %v548 = vpack.c.b16 %v538, %v538
      %v549 = vpack.c.b16 %v539, %v539
      %v550 = vpack.c.b16 %v540, %v540
      %v551 = vpack.c.b16 %v541, %v541
      %v552 = vpack.c.b16 %v542, %v542
      %v553 = vpack.c.b16 %v543, %v543
      %v554 = vpack.c.b16 %v544, %v544
      %v555 = vpack.c.b16 %v545, %v545
      %v556 = vpack.c.b16 %v546, %v546
      %vm557 = vsmask.f32 7424
      %v559 = vshrl.u32 %v517, 16
      %v561 = vshll.u32 %v517, 16
      %v563 = vrot.slane %v561, 1
      %v564 = vor.u32 %v559, %v563
      %v566 = vshll.u32 %v547, 16
      %v568 = vrot.slane %v566, 1
      %v569 = vsel %vm557, %v564, %v568
      %v571 = vshrl.u32 %v518, 16
      %v573 = vshll.u32 %v518, 16
      %v575 = vrot.slane %v573, 1
      %v576 = vor.u32 %v571, %v575
      %v578 = vshll.u32 %v548, 16
      %v580 = vrot.slane %v578, 1
      %v581 = vsel %vm557, %v576, %v580
      %v583 = vshrl.u32 %v519, 16
      %v585 = vshll.u32 %v519, 16
      %v587 = vrot.slane %v585, 1
      %v588 = vor.u32 %v583, %v587
      %v590 = vshll.u32 %v549, 16
      %v592 = vrot.slane %v590, 1
      %v593 = vsel %vm557, %v588, %v592
      %v595 = vshrl.u32 %v520, 16
      %v597 = vshll.u32 %v520, 16
      %v599 = vrot.slane %v597, 1
      %v600 = vor.u32 %v595, %v599
      %v602 = vshll.u32 %v550, 16
      %v604 = vrot.slane %v602, 1
      %v605 = vsel %vm557, %v600, %v604
      %v607 = vshrl.u32 %v521, 16
      %v609 = vshll.u32 %v521, 16
      %v611 = vrot.slane %v609, 1
      %v612 = vor.u32 %v607, %v611
      %v614 = vshll.u32 %v551, 16
      %v616 = vrot.slane %v614, 1
      %v617 = vsel %vm557, %v612, %v616
      %v619 = vshrl.u32 %v522, 16
      %v621 = vshll.u32 %v522, 16
      %v623 = vrot.slane %v621, 1
      %v624 = vor.u32 %v619, %v623
      %v626 = vshll.u32 %v552, 16
      %v628 = vrot.slane %v626, 1
      %v629 = vsel %vm557, %v624, %v628
      %v631 = vshrl.u32 %v523, 16
      %v633 = vshll.u32 %v523, 16
      %v635 = vrot.slane %v633, 1
      %v636 = vor.u32 %v631, %v635
      %v638 = vshll.u32 %v553, 16
      %v640 = vrot.slane %v638, 1
      %v641 = vsel %vm557, %v636, %v640
      %v643 = vshrl.u32 %v524, 16
      %v645 = vshll.u32 %v524, 16
      %v647 = vrot.slane %v645, 1
      %v648 = vor.u32 %v643, %v647
      %v650 = vshll.u32 %v554, 16
      %v652 = vrot.slane %v650, 1
      %v653 = vsel %vm557, %v648, %v652
      %v655 = vshrl.u32 %v525, 16
      %v657 = vshll.u32 %v525, 16
      %v659 = vrot.slane %v657, 1
      %v660 = vor.u32 %v655, %v659
      %v662 = vshll.u32 %v555, 16
      %v664 = vrot.slane %v662, 1
      %v665 = vsel %vm557, %v660, %v664
      %v667 = vshrl.u32 %v526, 16
      %v669 = vshll.u32 %v526, 16
      %v671 = vrot.slane %v669, 1
      %v672 = vor.u32 %v667, %v671
      %v674 = vshll.u32 %v556, 16
      %v676 = vrot.slane %v674, 1
      %v677 = vsel %vm557, %v672, %v676
      %678 = vrot.lane.b32.xlu0 %v569, 4
      %v679 = vpop.permute.xlu0 %678
      %680 = vrot.lane.b32.xlu0 %v581, 4
      %v681 = vpop.permute.xlu0 %680
      %682 = vrot.lane.b32.xlu0 %v593, 4
      %v683 = vpop.permute.xlu0 %682
      %684 = vrot.lane.b32.xlu0 %v605, 4
      %v685 = vpop.permute.xlu0 %684
      %686 = vrot.lane.b32.xlu0 %v617, 4
      %v687 = vpop.permute.xlu0 %686
      %688 = vrot.lane.b32.xlu0 %v629, 4
      %v689 = vpop.permute.xlu0 %688
      %690 = vrot.lane.b32.xlu0 %v641, 4
      %v691 = vpop.permute.xlu0 %690
      %692 = vrot.lane.b32.xlu0 %v653, 4
      %v693 = vpop.permute.xlu0 %692
      %694 = vrot.lane.b32.xlu0 %v665, 4
      %v695 = vpop.permute.xlu0 %694
      %696 = vrot.lane.b32.xlu0 %v677, 4
      %v697 = vpop.permute.xlu0 %696
      %vm698 = vcmask 1046528
      %v699 = vrot.slane %v517, 1
      %v700 = vrot.slane %v547, 1
      %v701 = vsel %vm698, %v699, %v700
      %v702 = vrot.slane %v518, 1
      %v703 = vrot.slane %v548, 1
      %v704 = vsel %vm698, %v702, %v703
      %v705 = vrot.slane %v519, 1
      %v706 = vrot.slane %v549, 1
      %v707 = vsel %vm698, %v705, %v706
      %v708 = vrot.slane %v520, 1
      %v709 = vrot.slane %v550, 1
      %v710 = vsel %vm698, %v708, %v709
      %v711 = vrot.slane %v521, 1
      %v712 = vrot.slane %v551, 1
      %v713 = vsel %vm698, %v711, %v712
      %v714 = vrot.slane %v522, 1
      %v715 = vrot.slane %v552, 1
      %v716 = vsel %vm698, %v714, %v715
      %v717 = vrot.slane %v523, 1
      %v718 = vrot.slane %v553, 1
      %v719 = vsel %vm698, %v717, %v718
      %v720 = vrot.slane %v524, 1
      %v721 = vrot.slane %v554, 1
      %v722 = vsel %vm698, %v720, %v721
      %v723 = vrot.slane %v525, 1
      %v724 = vrot.slane %v555, 1
      %v725 = vsel %vm698, %v723, %v724
      %v726 = vrot.slane %v526, 1
      %v727 = vrot.slane %v556, 1
      %v728 = vsel %vm698, %v726, %v727
      %729 = vrot.lane.b32.xlu0 %v701, 8
      %v730 = vpop.permute.xlu0 %729
      %731 = vrot.lane.b32.xlu0 %v704, 8
      %v732 = vpop.permute.xlu0 %731
      %733 = vrot.lane.b32.xlu0 %v707, 8
      %v734 = vpop.permute.xlu0 %733
      %735 = vrot.lane.b32.xlu0 %v710, 8
      %v736 = vpop.permute.xlu0 %735
      %737 = vrot.lane.b32.xlu0 %v713, 8
      %v738 = vpop.permute.xlu0 %737
      %739 = vrot.lane.b32.xlu0 %v716, 8
      %v740 = vpop.permute.xlu0 %739
      %741 = vrot.lane.b32.xlu0 %v719, 8
      %v742 = vpop.permute.xlu0 %741
      %743 = vrot.lane.b32.xlu0 %v722, 8
      %v744 = vpop.permute.xlu0 %743
      %745 = vrot.lane.b32.xlu0 %v725, 8
      %v746 = vpop.permute.xlu0 %745
      %747 = vrot.lane.b32.xlu0 %v728, 8
      %v748 = vpop.permute.xlu0 %747
      %vm749 = vcmask 31744
      %v751 = vsel %vm749, %v517, %v679
      %v753 = vsel %vm749, %v518, %v681
      %v755 = vsel %vm749, %v519, %v683
      %v757 = vsel %vm749, %v520, %v685
      %v759 = vsel %vm749, %v521, %v687
      %v761 = vsel %vm749, %v522, %v689
      %v763 = vsel %vm749, %v523, %v691
      %v765 = vsel %vm749, %v524, %v693
      %v767 = vsel %vm749, %v525, %v695
      %v769 = vsel %vm749, %v526, %v697
      %vm770 = vcmask 64512
      %v772 = vsel %vm770, %v751, %v730
      %v774 = vsel %vm770, %v753, %v732
      %v776 = vsel %vm770, %v755, %v734
      %v778 = vsel %vm770, %v757, %v736
      %v780 = vsel %vm770, %v759, %v738
      %v782 = vsel %vm770, %v761, %v740
      %v784 = vsel %vm770, %v763, %v742
      %v786 = vsel %vm770, %v765, %v744
      %v788 = vsel %vm770, %v767, %v746
      %v790 = vsel %vm770, %v769, %v748
      %vm791 = vcmask 97280
      %v793 = vsel %vm791, %v772, 0
      %v794 = vsel %vm791, %v774, 0
      %v795 = vsel %vm791, %v776, 0
      %v796 = vsel %vm791, %v778, 0
      %v797 = vsel %vm791, %v780, 0
      %v798 = vsel %vm791, %v782, 0
      %v799 = vsel %vm791, %v784, 0
      %v800 = vsel %vm791, %v786, 0
      %v801 = vsel %vm791, %v788, 0
      %v802 = vsel %vm791, %v790, 0
      %v803 = vld [vmem:[%s3] sm:$0xf]
      %v804 = vld [vmem:[%s3 + $0x4] sm:$0xf]
      %v807 = vunpack.c.l.b16 %v471
      %v808 = vunpack.c.l.b16 %v472
      %v809 = vpack.c.b16 %v808, %v807
      %v811 = vunpack.c.l.b16 %v473
      %v812 = vpack.c.b16 %v811, %v811
      %v814 = vshrl.u32 %v809, 16
      %v816 = vshll.u32 %v809, 16
      %v818 = vrot.slane %v816, 1
      %v819 = vor.u32 %v814, %v818
      %v821 = vshll.u32 %v812, 16
      %v823 = vrot.slane %v821, 1
      %v824 = vsel %vm557, %v819, %v823
      %825 = vrot.lane.b32.xlu0 %v824, 4
      %v826 = vpop.permute.xlu0 %825
      %v827 = vrot.slane %v809, 1
      %v828 = vrot.slane %v812, 1
      %v829 = vsel %vm698, %v827, %v828
      %830 = vrot.lane.b32.xlu0 %v829, 8
      %v831 = vpop.permute.xlu0 %830
      %v833 = vsel %vm749, %v809, %v826
      %v835 = vsel %vm770, %v833, %v831
      %v836 = vsel %vm791, %v835, 0
      %s837 = scalar_lea.vmem %s3, 8
      %v838 = vld [vmem:[%s837] sm:$0xf]
      %v839 = vld [vmem:[%s837 + $0x4] sm:$0xf]
      %v842 = vunpack.c.l.b16 %v838
      %v843 = vunpack.c.l.b16 %v839
      %v844 = vpack.c.b16 %v843, %v842
      %vm846 = vcmask 130048
      %v847 = vsel %vm846, %v794, 0
      %v849 = vsel %vm846, %v795, 0
      %v851 = vsel %vm846, %v796, 0
      %v853 = vsel %vm846, %v797, 0
      %v855 = vsel %vm846, %v798, 0
      %v857 = vsel %vm846, %v799, 0
      %v859 = vsel %vm846, %v800, 0
      %v861 = vsel %vm846, %v801, 0
      %v863 = vsel %vm846, %v802, 0
      %v865 = vsel %vm846, %v836, 0
      %867 = vmatprep.subr.bf16.mxu0 0
      %868 = vmatpush1.bf16.msra.mxu0 %v844
      %869 = vmatprep.subr.bf16.mxu0 0
      %870 = vmatpush1.bf16.msra.mxu0 0
      %871 = vmatprep.subr.bf16.mxu0 0
      %872 = vmatpush1.bf16.msra.mxu0 0
      %873 = vmatprep.subr.bf16.mxu0 0
      %874 = vmatpush1.bf16.msra.mxu0 0
      %875 = vmatprep.subr.bf16.mxu0 0
      %876 = vmatpush1.bf16.msra.mxu0 0
      %877 = vmatprep.subr.bf16.mxu0 0
      %878 = vmatpush1.bf16.msra.mxu0 0
      %879 = vmatprep.subr.bf16.mxu0 0
      %880 = vmatpush1.bf16.msra.mxu0 0
      %881 = vmatprep.subr.bf16.mxu0 0
      %882 = vmatpush1.bf16.msra.mxu0 0
      %883 = vmatprep.subr.bf16.mxu0 0
      %884 = vmatpush1.bf16.msra.mxu0 0
      %885 = vmatprep.subr.bf16.mxu0 0
      %886 = vmatpush1.bf16.msra.mxu0 0
      %887 = vmatprep.subr.bf16.mxu0 0
      %888 = vmatpush1.bf16.msra.mxu0 0
      %889 = vmatprep.subr.bf16.mxu0 0
      %890 = vmatpush1.bf16.msra.mxu0 0
      %891 = vmatprep.subr.bf16.mxu0 0
      %892 = vmatpush1.bf16.msra.mxu0 0
      %893 = vmatprep.subr.bf16.mxu0 0
      %894 = vmatpush1.bf16.msra.mxu0 0
      %895 = vmatprep.subr.bf16.mxu0 0
      %896 = vmatpush1.bf16.msra.mxu0 0
      %897 = vmatprep.subr.bf16.mxu0 0
      %898 = vmatpush1.bf16.msra.mxu0 0
      %899 = vmatprep.mubr.bf16.mxu0 0
      %900 = vmatmul.mubr.bf16.gmra.mrb[0].mxu0 %v847
      %v901 = vpop.f32.mrb[0].mxu0
      %v902 = vadd.f32 0.0, %v901
      %v903 = vpop.f32.mrb[0].mxu0
      %v904 = vpop.f32.mrb[0].mxu0
      %v905 = vadd.f32 0.0, %v904
      %v906 = vpop.f32.mrb[0].mxu0
      %907 = vmatprep.mubr.bf16.mxu0 0
      %908 = vmatmul.mubr.bf16.gmra.mrb[0].mxu0 %v849
      %v909 = vpop.f32.mrb[0].mxu0
      %v910 = vadd.f32 0.0, %v909
      %v911 = vpop.f32.mrb[0].mxu0
      %v912 = vpop.f32.mrb[0].mxu0
      %v913 = vadd.f32 0.0, %v912
      %v914 = vpop.f32.mrb[0].mxu0
      %915 = vmatprep.mubr.bf16.mxu0 0
      %916 = vmatmul.mubr.bf16.gmra.mrb[0].mxu0 %v851
      %v917 = vpop.f32.mrb[0].mxu0
      %v918 = vadd.f32 0.0, %v917
      %v919 = vpop.f32.mrb[0].mxu0
      %v920 = vpop.f32.mrb[0].mxu0
      %v921 = vadd.f32 0.0, %v920
      %v922 = vpop.f32.mrb[0].mxu0
      %923 = vmatprep.mubr.bf16.mxu0 0
      %924 = vmatmul.mubr.bf16.gmra.mrb[0].mxu0 %v853
      %v925 = vpop.f32.mrb[0].mxu0
      %v926 = vadd.f32 0.0, %v925
      %v927 = vpop.f32.mrb[0].mxu0
      %v928 = vpop.f32.mrb[0].mxu0
      %v929 = vadd.f32 0.0, %v928
      %v930 = vpop.f32.mrb[0].mxu0
      %931 = vmatprep.mubr.bf16.mxu0 0
      %932 = vmatmul.mubr.bf16.gmra.mrb[0].mxu0 %v855
      %v933 = vpop.f32.mrb[0].mxu0
      %v934 = vadd.f32 0.0, %v933
      %v935 = vpop.f32.mrb[0].mxu0
      %v936 = vpop.f32.mrb[0].mxu0
      %v937 = vadd.f32 0.0, %v936
      %v938 = vpop.f32.mrb[0].mxu0
      %939 = vmatprep.mubr.bf16.mxu0 0
      %940 = vmatmul.mubr.bf16.gmra.mrb[0].mxu0 %v857
      %v941 = vpop.f32.mrb[0].mxu0
      %v942 = vadd.f32 0.0, %v941
      %v943 = vpop.f32.mrb[0].mxu0
      %v944 = vpop.f32.mrb[0].mxu0
      %v945 = vadd.f32 0.0, %v944
      %v946 = vpop.f32.mrb[0].mxu0
      %947 = vmatprep.mubr.bf16.mxu0 0
      %948 = vmatmul.mubr.bf16.gmra.mrb[0].mxu0 %v859
      %v949 = vpop.f32.mrb[0].mxu0
      %v950 = vadd.f32 0.0, %v949
      %v951 = vpop.f32.mrb[0].mxu0
      %v952 = vpop.f32.mrb[0].mxu0
      %v953 = vadd.f32 0.0, %v952
      %v954 = vpop.f32.mrb[0].mxu0
      %955 = vmatprep.mubr.bf16.mxu0 0
      %956 = vmatmul.mubr.bf16.gmra.mrb[0].mxu0 %v861
      %v957 = vpop.f32.mrb[0].mxu0
      %v958 = vadd.f32 0.0, %v957
      %v959 = vpop.f32.mrb[0].mxu0
      %v960 = vpop.f32.mrb[0].mxu0
      %v961 = vadd.f32 0.0, %v960
      %v962 = vpop.f32.mrb[0].mxu0
      %963 = vmatprep.mubr.bf16.mxu0 0
      %964 = vmatmul.mubr.bf16.gmra.mrb[0].mxu0 %v863
      %v965 = vpop.f32.mrb[0].mxu0
      %v966 = vadd.f32 0.0, %v965
      %v967 = vpop.f32.mrb[0].mxu0
      %v968 = vpop.f32.mrb[0].mxu0
      %v969 = vadd.f32 0.0, %v968
      %v970 = vpop.f32.mrb[0].mxu0
      %971 = vmatprep.mubr.bf16.mxu0 0
      %972 = vmatmul.mubr.bf16.gmra.mrb[0].mxu0 %v865
      %v973 = vpop.f32.mrb[0].mxu0
      %v974 = vadd.f32 0.0, %v973
      %v975 = vpop.f32.mrb[0].mxu0
      %v976 = vpop.f32.mrb[0].mxu0
      %v977 = vadd.f32 0.0, %v976
      %v978 = vpop.f32.mrb[0].mxu0
      %979 = vdwg.mxu0
      %v982 = vunpack.c.l.b16 %v803
      %v983 = vunpack.c.l.b16 %v804
      %v984 = vpack.c.b16 %v983, %v982
      %v986 = vsel %vm846, %v793, 0
      %988 = vmatprep.subr.bf16.mxu0 0
      %989 = vmatpush1.bf16.msra.mxu0 %v984
      %990 = vmatprep.subr.bf16.mxu0 0
      %991 = vmatpush1.bf16.msra.mxu0 0
      %992 = vmatprep.subr.bf16.mxu0 0
      %993 = vmatpush1.bf16.msra.mxu0 0
      %994 = vmatprep.subr.bf16.mxu0 0
      %995 = vmatpush1.bf16.msra.mxu0 0
      %996 = vmatprep.subr.bf16.mxu0 0
      %997 = vmatpush1.bf16.msra.mxu0 0
      %998 = vmatprep.subr.bf16.mxu0 0
      %999 = vmatpush1.bf16.msra.mxu0 0
      %1000 = vmatprep.subr.bf16.mxu0 0
      %1001 = vmatpush1.bf16.msra.mxu0 0
      %1002 = vmatprep.subr.bf16.mxu0 0
      %1003 = vmatpush1.bf16.msra.mxu0 0
      %1004 = vmatprep.subr.bf16.mxu0 0
      %1005 = vmatpush1.bf16.msra.mxu0 0
      %1006 = vmatprep.subr.bf16.mxu0 0
      %1007 = vmatpush1.bf16.msra.mxu0 0
      %1008 = vmatprep.subr.bf16.mxu0 0
      %1009 = vmatpush1.bf16.msra.mxu0 0
      %1010 = vmatprep.subr.bf16.mxu0 0
      %1011 = vmatpush1.bf16.msra.mxu0 0
      %1012 = vmatprep.subr.bf16.mxu0 0
      %1013 = vmatpush1.bf16.msra.mxu0 0
      %1014 = vmatprep.subr.bf16.mxu0 0
      %1015 = vmatpush1.bf16.msra.mxu0 0
      %1016 = vmatprep.subr.bf16.mxu0 0
      %1017 = vmatpush1.bf16.msra.mxu0 0
      %1018 = vmatprep.subr.bf16.mxu0 0
      %1019 = vmatpush1.bf16.msra.mxu0 0
      %1020 = vmatprep.mubr.bf16.mxu0 0
      %1021 = vmatmul.mubr.bf16.gmra.mrb[0].mxu0 %v986
      %v1022 = vpop.f32.mrb[0].mxu0
      %v1023 = vadd.f32 %v902, %v1022
      %v1024 = vpop.f32.mrb[0].mxu0
      %v1025 = vpop.f32.mrb[0].mxu0
      %v1026 = vadd.f32 %v905, %v1025
      %v1027 = vpop.f32.mrb[0].mxu0
      %1028 = vmatprep.mubr.bf16.mxu0 0
      %1029 = vmatmul.mubr.bf16.gmra.mrb[0].mxu0 %v847
      %v1030 = vpop.f32.mrb[0].mxu0
      %v1031 = vadd.f32 %v910, %v1030
      %v1032 = vpop.f32.mrb[0].mxu0
      %v1033 = vpop.f32.mrb[0].mxu0
      %v1034 = vadd.f32 %v913, %v1033
      %v1035 = vpop.f32.mrb[0].mxu0
      %1036 = vmatprep.mubr.bf16.mxu0 0
      %1037 = vmatmul.mubr.bf16.gmra.mrb[0].mxu0 %v849
      %v1038 = vpop.f32.mrb[0].mxu0
      %v1039 = vadd.f32 %v918, %v1038
      %v1040 = vpop.f32.mrb[0].mxu0
      %v1041 = vpop.f32.mrb[0].mxu0
      %v1042 = vadd.f32 %v921, %v1041
      %v1043 = vpop.f32.mrb[0].mxu0
      %1044 = vmatprep.mubr.bf16.mxu0 0
      %1045 = vmatmul.mubr.bf16.gmra.mrb[0].mxu0 %v851
      %v1046 = vpop.f32.mrb[0].mxu0
      %v1047 = vadd.f32 %v926, %v1046
      %v1048 = vpop.f32.mrb[0].mxu0
      %v1049 = vpop.f32.mrb[0].mxu0
      %v1050 = vadd.f32 %v929, %v1049
      %v1051 = vpop.f32.mrb[0].mxu0
      %1052 = vmatprep.mubr.bf16.mxu0 0
      %1053 = vmatmul.mubr.bf16.gmra.mrb[0].mxu0 %v853
      %v1054 = vpop.f32.mrb[0].mxu0
      %v1055 = vadd.f32 %v934, %v1054
      %v1056 = vpop.f32.mrb[0].mxu0
      %v1057 = vpop.f32.mrb[0].mxu0
      %v1058 = vadd.f32 %v937, %v1057
      %v1059 = vpop.f32.mrb[0].mxu0
      %1060 = vmatprep.mubr.bf16.mxu0 0
      %1061 = vmatmul.mubr.bf16.gmra.mrb[0].mxu0 %v855
      %v1062 = vpop.f32.mrb[0].mxu0
      %v1063 = vadd.f32 %v942, %v1062
      %v1064 = vpop.f32.mrb[0].mxu0
      %v1065 = vpop.f32.mrb[0].mxu0
      %v1066 = vadd.f32 %v945, %v1065
      %v1067 = vpop.f32.mrb[0].mxu0
      %1068 = vmatprep.mubr.bf16.mxu0 0
      %1069 = vmatmul.mubr.bf16.gmra.mrb[0].mxu0 %v857
      %v1070 = vpop.f32.mrb[0].mxu0
      %v1071 = vadd.f32 %v950, %v1070
      %v1072 = vpop.f32.mrb[0].mxu0
      %v1073 = vpop.f32.mrb[0].mxu0
      %v1074 = vadd.f32 %v953, %v1073
      %v1075 = vpop.f32.mrb[0].mxu0
      %1076 = vmatprep.mubr.bf16.mxu0 0
      %1077 = vmatmul.mubr.bf16.gmra.mrb[0].mxu0 %v859
      %v1078 = vpop.f32.mrb[0].mxu0
      %v1079 = vadd.f32 %v958, %v1078
      %v1080 = vpop.f32.mrb[0].mxu0
      %v1081 = vpop.f32.mrb[0].mxu0
      %v1082 = vadd.f32 %v961, %v1081
      %v1083 = vpop.f32.mrb[0].mxu0
      %1084 = vmatprep.mubr.bf16.mxu0 0
      %1085 = vmatmul.mubr.bf16.gmra.mrb[0].mxu0 %v861
      %v1086 = vpop.f32.mrb[0].mxu0
      %v1087 = vadd.f32 %v966, %v1086
      %v1088 = vpop.f32.mrb[0].mxu0
      %v1089 = vpop.f32.mrb[0].mxu0
      %v1090 = vadd.f32 %v969, %v1089
      %v1091 = vpop.f32.mrb[0].mxu0
      %1092 = vmatprep.mubr.bf16.mxu0 0
      %1093 = vmatmul.mubr.bf16.gmra.mrb[0].mxu0 %v863
      %v1094 = vpop.f32.mrb[0].mxu0
      %v1095 = vadd.f32 %v974, %v1094
      %v1096 = vpop.f32.mrb[0].mxu0
      %v1097 = vpop.f32.mrb[0].mxu0
      %v1098 = vadd.f32 %v977, %v1097
      %v1099 = vpop.f32.mrb[0].mxu0
      %1100 = vdwg.mxu0
      %v1103 = vunpack.c.l.b16 %v474
      %v1104 = vunpack.c.l.b16 %v475
      %v1105 = vpack.c.b16 %v1104, %v1103
      %v1107 = vunpack.c.l.b16 %v476
      %v1108 = vpack.c.b16 %v1107, %v1107
      %v1110 = vshrl.u32 %v1105, 16
      %v1112 = vshll.u32 %v1105, 16
      %v1114 = vrot.slane %v1112, 1
      %v1115 = vor.u32 %v1110, %v1114
      %v1117 = vshll.u32 %v1108, 16
      %v1119 = vrot.slane %v1117, 1
      %v1120 = vsel %vm557, %v1115, %v1119
      %1121 = vrot.lane.b32.xlu0 %v1120, 4
      %v1122 = vpop.permute.xlu0 %1121
      %v1123 = vrot.slane %v1105, 1
      %v1124 = vrot.slane %v1108, 1
      %v1125 = vsel %vm698, %v1123, %v1124
      %1126 = vrot.lane.b32.xlu0 %v1125, 8
      %v1127 = vpop.permute.xlu0 %1126
      %v1129 = vsel %vm749, %v1105, %v1122
      %v1131 = vsel %vm770, %v1129, %v1127
      %v1132 = vsel %vm791, %v1131, 0
      %s1133 = scalar_lea.vmem %s3, 16
      %v1134 = vld [vmem:[%s1133] sm:$0xf]
      %v1135 = vld [vmem:[%s1133 + $0x4] sm:$0xf]
      %v1138 = vunpack.c.l.b16 %v1134
      %v1139 = vunpack.c.l.b16 %v1135
      %v1140 = vpack.c.b16 %v1139, %v1138
      %v1142 = vsel %vm846, %v1132, 0
      %1144 = vmatprep.subr.bf16.mxu0 0
      %1145 = vmatpush1.bf16.msra.mxu0 %v1140
      %1146 = vmatprep.subr.bf16.mxu0 0
      %1147 = vmatpush1.bf16.msra.mxu0 0
      %1148 = vmatprep.subr.bf16.mxu0 0
      %1149 = vmatpush1.bf16.msra.mxu0 0
      %1150 = vmatprep.subr.bf16.mxu0 0
      %1151 = vmatpush1.bf16.msra.mxu0 0
      %1152 = vmatprep.subr.bf16.mxu0 0
      %1153 = vmatpush1.bf16.msra.mxu0 0
      %1154 = vmatprep.subr.bf16.mxu0 0
      %1155 = vmatpush1.bf16.msra.mxu0 0
      %1156 = vmatprep.subr.bf16.mxu0 0
      %1157 = vmatpush1.bf16.msra.mxu0 0
      %1158 = vmatprep.subr.bf16.mxu0 0
      %1159 = vmatpush1.bf16.msra.mxu0 0
      %1160 = vmatprep.subr.bf16.mxu0 0
      %1161 = vmatpush1.bf16.msra.mxu0 0
      %1162 = vmatprep.subr.bf16.mxu0 0
      %1163 = vmatpush1.bf16.msra.mxu0 0
      %1164 = vmatprep.subr.bf16.mxu0 0
      %1165 = vmatpush1.bf16.msra.mxu0 0
      %1166 = vmatprep.subr.bf16.mxu0 0
      %1167 = vmatpush1.bf16.msra.mxu0 0
      %1168 = vmatprep.subr.bf16.mxu0 0
      %1169 = vmatpush1.bf16.msra.mxu0 0
      %1170 = vmatprep.subr.bf16.mxu0 0
      %1171 = vmatpush1.bf16.msra.mxu0 0
      %1172 = vmatprep.subr.bf16.mxu0 0
      %1173 = vmatpush1.bf16.msra.mxu0 0
      %1174 = vmatprep.subr.bf16.mxu0 0
      %1175 = vmatpush1.bf16.msra.mxu0 0
      %1176 = vmatprep.mubr.bf16.mxu0 0
      %1177 = vmatmul.mubr.bf16.gmra.mrb[0].mxu0 %v849
      %v1178 = vpop.f32.mrb[0].mxu0
      %v1179 = vadd.f32 0.0, %v1178
      %v1180 = vpop.f32.mrb[0].mxu0
      %v1181 = vpop.f32.mrb[0].mxu0
      %v1182 = vadd.f32 0.0, %v1181
      %v1183 = vpop.f32.mrb[0].mxu0
      %1184 = vmatprep.mubr.bf16.mxu0 0
      %1185 = vmatmul.mubr.bf16.gmra.mrb[0].mxu0 %v851
      %v1186 = vpop.f32.mrb[0].mxu0
      %v1187 = vadd.f32 0.0, %v1186
      %v1188 = vpop.f32.mrb[0].mxu0
      %v1189 = vpop.f32.mrb[0].mxu0
      %v1190 = vadd.f32 0.0, %v1189
      %v1191 = vpop.f32.mrb[0].mxu0
      %1192 = vmatprep.mubr.bf16.mxu0 0
      %1193 = vmatmul.mubr.bf16.gmra.mrb[0].mxu0 %v853
      %v1194 = vpop.f32.mrb[0].mxu0
      %v1195 = vadd.f32 0.0, %v1194
      %v1196 = vpop.f32.mrb[0].mxu0
      %v1197 = vpop.f32.mrb[0].mxu0
      %v1198 = vadd.f32 0.0, %v1197
      %v1199 = vpop.f32.mrb[0].mxu0
      %1200 = vmatprep.mubr.bf16.mxu0 0
      %1201 = vmatmul.mubr.bf16.gmra.mrb[0].mxu0 %v855
      %v1202 = vpop.f32.mrb[0].mxu0
      %v1203 = vadd.f32 0.0, %v1202
      %v1204 = vpop.f32.mrb[0].mxu0
      %v1205 = vpop.f32.mrb[0].mxu0
      %v1206 = vadd.f32 0.0, %v1205
      %v1207 = vpop.f32.mrb[0].mxu0
      %1208 = vmatprep.mubr.bf16.mxu0 0
      %1209 = vmatmul.mubr.bf16.gmra.mrb[0].mxu0 %v857
      %v1210 = vpop.f32.mrb[0].mxu0
      %v1211 = vadd.f32 0.0, %v1210
      %v1212 = vpop.f32.mrb[0].mxu0
      %v1213 = vpop.f32.mrb[0].mxu0
      %v1214 = vadd.f32 0.0, %v1213
      %v1215 = vpop.f32.mrb[0].mxu0
      %1216 = vmatprep.mubr.bf16.mxu0 0
      %1217 = vmatmul.mubr.bf16.gmra.mrb[0].mxu0 %v859
      %v1218 = vpop.f32.mrb[0].mxu0
      %v1219 = vadd.f32 0.0, %v1218
      %v1220 = vpop.f32.mrb[0].mxu0
      %v1221 = vpop.f32.mrb[0].mxu0
      %v1222 = vadd.f32 0.0, %v1221
      %v1223 = vpop.f32.mrb[0].mxu0
      %1224 = vmatprep.mubr.bf16.mxu0 0
      %1225 = vmatmul.mubr.bf16.gmra.mrb[0].mxu0 %v861
      %v1226 = vpop.f32.mrb[0].mxu0
      %v1227 = vadd.f32 0.0, %v1226
      %v1228 = vpop.f32.mrb[0].mxu0
      %v1229 = vpop.f32.mrb[0].mxu0
      %v1230 = vadd.f32 0.0, %v1229
      %v1231 = vpop.f32.mrb[0].mxu0
      %1232 = vmatprep.mubr.bf16.mxu0 0
      %1233 = vmatmul.mubr.bf16.gmra.mrb[0].mxu0 %v863
      %v1234 = vpop.f32.mrb[0].mxu0
      %v1235 = vadd.f32 0.0, %v1234
      %v1236 = vpop.f32.mrb[0].mxu0
      %v1237 = vpop.f32.mrb[0].mxu0
      %v1238 = vadd.f32 0.0, %v1237
      %v1239 = vpop.f32.mrb[0].mxu0
      %1240 = vmatprep.mubr.bf16.mxu0 0
      %1241 = vmatmul.mubr.bf16.gmra.mrb[0].mxu0 %v865
      %v1242 = vpop.f32.mrb[0].mxu0
      %v1243 = vadd.f32 0.0, %v1242
      %v1244 = vpop.f32.mrb[0].mxu0
      %v1245 = vpop.f32.mrb[0].mxu0
      %v1246 = vadd.f32 0.0, %v1245
      %v1247 = vpop.f32.mrb[0].mxu0
      %1248 = vmatprep.mubr.bf16.mxu0 0
      %1249 = vmatmul.mubr.bf16.gmra.mrb[0].mxu0 %v1142
      %v1250 = vpop.f32.mrb[0].mxu0
      %v1251 = vadd.f32 0.0, %v1250
      %v1252 = vpop.f32.mrb[0].mxu0
      %v1253 = vpop.f32.mrb[0].mxu0
      %v1254 = vadd.f32 0.0, %v1253
      %v1255 = vpop.f32.mrb[0].mxu0
      %1256 = vdwg.mxu0
      %v1257 = vadd.f32 %v1023, %v1179
      %v1258 = vadd.f32 %v1026, %v1182
      %v1259 = vadd.f32 %v1031, %v1187
      %v1260 = vadd.f32 %v1034, %v1190
      %v1261 = vadd.f32 %v1039, %v1195
      %v1262 = vadd.f32 %v1042, %v1198
      %v1263 = vadd.f32 %v1047, %v1203
      %v1264 = vadd.f32 %v1050, %v1206
      %v1265 = vadd.f32 %v1055, %v1211
      %v1266 = vadd.f32 %v1058, %v1214
      %v1267 = vadd.f32 %v1063, %v1219
      %v1268 = vadd.f32 %v1066, %v1222
      %v1269 = vadd.f32 %v1071, %v1227
      %v1270 = vadd.f32 %v1074, %v1230
      %v1271 = vadd.f32 %v1079, %v1235
      %v1272 = vadd.f32 %v1082, %v1238
      %v1273 = vadd.f32 %v1087, %v1243
      %v1274 = vadd.f32 %v1090, %v1246
      %v1275 = vadd.f32 %v1095, %v1251
      %v1276 = vadd.f32 %v1098, %v1254
      %v1277 = vld [vmem:[%s4] sm:$0x1]
      %v1279 = vlaneseq
      %v1280 = vshrl.u32 %v1279, 7
      %v1281 = vsub.s32 0, %v1280
      %v1282 = vrot.slane %v1277, %v1281
      %v1284 = vadd.f32 %v1257, %v1282
      %v1285 = vadd.f32 %v1258, %v1282
      %v1286 = vadd.f32 %v1259, %v1282
      %v1287 = vadd.f32 %v1260, %v1282
      %v1288 = vadd.f32 %v1261, %v1282
      %v1289 = vadd.f32 %v1262, %v1282
      %v1290 = vadd.f32 %v1263, %v1282
      %v1291 = vadd.f32 %v1264, %v1282
      %v1292 = vadd.f32 %v1265, %v1282
      %v1293 = vadd.f32 %v1266, %v1282
      %v1294 = vadd.f32 %v1267, %v1282
      %v1295 = vadd.f32 %v1268, %v1282
      %v1296 = vadd.f32 %v1269, %v1282
      %v1297 = vadd.f32 %v1270, %v1282
      %v1298 = vadd.f32 %v1271, %v1282
      %v1299 = vadd.f32 %v1272, %v1282
      %v1300 = vadd.f32 %v1273, %v1282
      %v1301 = vadd.f32 %v1274, %v1282
      %v1302 = vadd.f32 %v1275, %v1282
      %v1303 = vadd.f32 %v1276, %v1282
      %v1304 = vmax.f32 %v1284, 0.0
      %v1305 = vmax.f32 %v1285, 0.0
      %v1306 = vmax.f32 %v1286, 0.0
      %v1307 = vmax.f32 %v1287, 0.0
      %v1308 = vmax.f32 %v1288, 0.0
      %v1309 = vmax.f32 %v1289, 0.0
      %v1310 = vmax.f32 %v1290, 0.0
      %v1311 = vmax.f32 %v1291, 0.0
      %v1312 = vmax.f32 %v1292, 0.0
      %v1313 = vmax.f32 %v1293, 0.0
      %v1314 = vmax.f32 %v1294, 0.0
      %v1315 = vmax.f32 %v1295, 0.0
      %v1316 = vmax.f32 %v1296, 0.0
      %v1317 = vmax.f32 %v1297, 0.0
      %v1318 = vmax.f32 %v1298, 0.0
      %v1319 = vmax.f32 %v1299, 0.0
      %v1320 = vmax.f32 %v1300, 0.0
      %v1321 = vmax.f32 %v1301, 0.0
      %v1322 = vmax.f32 %v1302, 0.0
      %v1323 = vmax.f32 %v1303, 0.0
      %v1324 = vpack.c.bf16 %v1305, %v1304
      %v1325 = vpack.c.bf16 %v1307, %v1306
      %v1326 = vpack.c.bf16 %v1309, %v1308
      %v1327 = vpack.c.bf16 %v1311, %v1310
      %v1328 = vpack.c.bf16 %v1313, %v1312
      %v1329 = vpack.c.bf16 %v1315, %v1314
      %v1330 = vpack.c.bf16 %v1317, %v1316
      %v1331 = vpack.c.bf16 %v1319, %v1318
      %v1332 = vpack.c.bf16 %v1321, %v1320
      %v1333 = vpack.c.bf16 %v1323, %v1322
      %v1335 = vshrl.u32 %v1324, 16
      %v1337 = vrot.slane %v1335, 7
      %v1338 = vshll.u32 %v1324, 16
      %v1340 = vor.u32 %v1337, %v1338
      %v1342 = vshrl.u32 %v1325, 16
      %v1344 = vrot.slane %v1342, 7
      %v1345 = vshll.u32 %v1325, 16
      %v1347 = vor.u32 %v1344, %v1345
      %v1349 = vshrl.u32 %v1326, 16
      %v1351 = vrot.slane %v1349, 7
      %v1352 = vshll.u32 %v1326, 16
      %v1354 = vor.u32 %v1351, %v1352
      %v1356 = vshrl.u32 %v1327, 16
      %v1358 = vrot.slane %v1356, 7
      %v1359 = vshll.u32 %v1327, 16
      %v1361 = vor.u32 %v1358, %v1359
      %v1363 = vshrl.u32 %v1328, 16
      %v1365 = vrot.slane %v1363, 7
      %v1366 = vshll.u32 %v1328, 16
      %v1368 = vor.u32 %v1365, %v1366
      %v1370 = vshrl.u32 %v1329, 16
      %v1372 = vrot.slane %v1370, 7
      %v1373 = vshll.u32 %v1329, 16
      %v1375 = vor.u32 %v1372, %v1373
      %v1377 = vshrl.u32 %v1330, 16
      %v1379 = vrot.slane %v1377, 7
      %v1380 = vshll.u32 %v1330, 16
      %v1382 = vor.u32 %v1379, %v1380
      %v1384 = vshrl.u32 %v1331, 16
      %v1386 = vrot.slane %v1384, 7
      %v1387 = vshll.u32 %v1331, 16
      %v1389 = vor.u32 %v1386, %v1387
      %v1391 = vshrl.u32 %v1332, 16
      %v1393 = vrot.slane %v1391, 7
      %v1394 = vshll.u32 %v1332, 16
      %v1396 = vor.u32 %v1393, %v1394
      %v1398 = vshrl.u32 %v1333, 16
      %v1400 = vrot.slane %v1398, 7
      %v1401 = vshll.u32 %v1333, 16
      %v1403 = vor.u32 %v1400, %v1401
      %vm1424 = vcmask 1040384
      %vm1425 = vsmask.f32 256
      %vm1426 = vmand %vm1424, %vm1425
      %v1427 = vsel %vm1426, 0, %v1340
      %v1428 = vsel %vm1426, 0, %v1347
      %v1429 = vsel %vm1426, 0, %v1354
      %v1430 = vsel %vm1426, 0, %v1361
      %v1431 = vsel %vm1426, 0, %v1368
      %v1432 = vsel %vm1426, 0, %v1375
      %v1433 = vsel %vm1426, 0, %v1382
      %v1434 = vsel %vm1426, 0, %v1389
      %v1435 = vsel %vm1426, 0, %v1396
      %v1436 = vsel %vm1426, 0, %v1403
      %v1437 = vsel %vm1426, %v1337, 0
      %v1438 = vsel %vm1426, %v1344, 0
      %v1439 = vsel %vm1426, %v1351, 0
      %v1440 = vsel %vm1426, %v1358, 0
      %v1441 = vsel %vm1426, %v1365, 0
      %v1442 = vsel %vm1426, %v1372, 0
      %v1443 = vsel %vm1426, %v1379, 0
      %v1444 = vsel %vm1426, %v1386, 0
      %v1445 = vsel %vm1426, %v1393, 0
      %v1446 = vsel %vm1426, %v1400, 0
      %v1467 = vunpack.c.l.b16 %v1427
      %v1468 = vunpack.c.h.b16 %v1427
      %v1469 = vunpack.c.l.b16 %v1437
      %v1470 = vunpack.c.l.b16 %v1428
      %v1471 = vunpack.c.h.b16 %v1428
      %v1472 = vunpack.c.l.b16 %v1438
      %v1473 = vunpack.c.l.b16 %v1429
      %v1474 = vunpack.c.h.b16 %v1429
      %v1475 = vunpack.c.l.b16 %v1439
      %v1476 = vunpack.c.l.b16 %v1430
      %v1477 = vunpack.c.h.b16 %v1430
      %v1478 = vunpack.c.l.b16 %v1440
      %v1479 = vunpack.c.l.b16 %v1431
      %v1480 = vunpack.c.h.b16 %v1431
      %v1481 = vunpack.c.l.b16 %v1441
      %v1482 = vunpack.c.l.b16 %v1432
      %v1483 = vunpack.c.h.b16 %v1432
      %v1484 = vunpack.c.l.b16 %v1442
      %v1485 = vunpack.c.l.b16 %v1433
      %v1486 = vunpack.c.h.b16 %v1433
      %v1487 = vunpack.c.l.b16 %v1443
      %v1488 = vunpack.c.l.b16 %v1434
      %v1489 = vunpack.c.h.b16 %v1434
      %v1490 = vunpack.c.l.b16 %v1444
      %v1491 = vunpack.c.l.b16 %v1435
      %v1492 = vunpack.c.h.b16 %v1435
      %v1493 = vunpack.c.l.b16 %v1445
      %v1494 = vunpack.c.l.b16 %v1436
      %v1495 = vunpack.c.h.b16 %v1436
      %v1496 = vunpack.c.l.b16 %v1446
      %v1497 = vpack.c.b16 %v1467, %v1467
      %v1498 = vpack.c.b16 %v1468, %v1468
      %v1499 = vpack.c.b16 %v1469, %v1469
      %v1500 = vpack.c.b16 %v1470, %v1470
      %v1501 = vpack.c.b16 %v1471, %v1471
      %v1502 = vpack.c.b16 %v1472, %v1472
      %v1503 = vpack.c.b16 %v1473, %v1473
      %v1504 = vpack.c.b16 %v1474, %v1474
      %v1505 = vpack.c.b16 %v1475, %v1475
      %v1506 = vpack.c.b16 %v1476, %v1476
      %v1507 = vpack.c.b16 %v1477, %v1477
      %v1508 = vpack.c.b16 %v1478, %v1478
      %v1509 = vpack.c.b16 %v1479, %v1479
      %v1510 = vpack.c.b16 %v1480, %v1480
      %v1511 = vpack.c.b16 %v1481, %v1481
      %v1512 = vpack.c.b16 %v1482, %v1482
      %v1513 = vpack.c.b16 %v1483, %v1483
      %v1514 = vpack.c.b16 %v1484, %v1484
      %v1515 = vpack.c.b16 %v1485, %v1485
      %v1516 = vpack.c.b16 %v1486, %v1486
      %v1517 = vpack.c.b16 %v1487, %v1487
      %v1518 = vpack.c.b16 %v1488, %v1488
      %v1519 = vpack.c.b16 %v1489, %v1489
      %v1520 = vpack.c.b16 %v1490, %v1490
      %v1521 = vpack.c.b16 %v1491, %v1491
      %v1522 = vpack.c.b16 %v1492, %v1492
      %v1523 = vpack.c.b16 %v1493, %v1493
      %v1524 = vpack.c.b16 %v1494, %v1494
      %v1525 = vpack.c.b16 %v1495, %v1495
      %v1526 = vpack.c.b16 %v1496, %v1496
      %vm1557 = vcmask 27648
      %1558 = vst.msk [vmem:[#allocation2] sm:$0xf] %vm1557, %v1497
      %1559 = vst.msk [vmem:[#allocation2 + $0x4] sm:$0xf] %vm1557, %v1498
      %vm1560 = vcmask 24576
      %1561 = vst.msk [vmem:[#allocation2 + $0x8] sm:$0x1] %vm1560, %v1499
      %1562 = vst.msk [vmem:[#allocation2 + $0xc] sm:$0xf] %vm1557, %v1500
      %1563 = vst.msk [vmem:[#allocation2 + $0x10] sm:$0xf] %vm1557, %v1501
      %1564 = vst.msk [vmem:[#allocation2 + $0x14] sm:$0x1] %vm1560, %v1502
      %1565 = vst.msk [vmem:[#allocation2 + $0x18] sm:$0xf] %vm1557, %v1503
      %1566 = vst.msk [vmem:[#allocation2 + $0x1c] sm:$0xf] %vm1557, %v1504
      %1567 = vst.msk [vmem:[#allocation2 + $0x20] sm:$0x1] %vm1560, %v1505
      %1568 = vst.msk [vmem:[#allocation2 + $0x24] sm:$0xf] %vm1557, %v1506
      %1569 = vst.msk [vmem:[#allocation2 + $0x28] sm:$0xf] %vm1557, %v1507
      %1570 = vst.msk [vmem:[#allocation2 + $0x2c] sm:$0x1] %vm1560, %v1508
      %1571 = vst.msk [vmem:[#allocation2 + $0x30] sm:$0xf] %vm1557, %v1509
      %1572 = vst.msk [vmem:[#allocation2 + $0x34] sm:$0xf] %vm1557, %v1510
      %1573 = vst.msk [vmem:[#allocation2 + $0x38] sm:$0x1] %vm1560, %v1511
      %1574 = vst.msk [vmem:[#allocation2 + $0x3c] sm:$0xf] %vm1557, %v1512
      %1575 = vst.msk [vmem:[#allocation2 + $0x40] sm:$0xf] %vm1557, %v1513
      %1576 = vst.msk [vmem:[#allocation2 + $0x44] sm:$0x1] %vm1560, %v1514
      %1577 = vst.msk [vmem:[#allocation2 + $0x48] sm:$0xf] %vm1557, %v1515
      %1578 = vst.msk [vmem:[#allocation2 + $0x4c] sm:$0xf] %vm1557, %v1516
      %1579 = vst.msk [vmem:[#allocation2 + $0x50] sm:$0x1] %vm1560, %v1517
      %1580 = vst.msk [vmem:[#allocation2 + $0x54] sm:$0xf] %vm1557, %v1518
      %1581 = vst.msk [vmem:[#allocation2 + $0x58] sm:$0xf] %vm1557, %v1519
      %1582 = vst.msk [vmem:[#allocation2 + $0x5c] sm:$0x1] %vm1560, %v1520
      %1583 = vst.msk [vmem:[#allocation2 + $0x60] sm:$0xf] %vm1557, %v1521
      %1584 = vst.msk [vmem:[#allocation2 + $0x64] sm:$0xf] %vm1557, %v1522
      %1585 = vst.msk [vmem:[#allocation2 + $0x68] sm:$0x1] %vm1560, %v1523
      %1586 = vst.msk [vmem:[#allocation2 + $0x6c] sm:$0xf] %vm1557, %v1524
      %1587 = vst.msk [vmem:[#allocation2 + $0x70] sm:$0xf] %vm1557, %v1525
      %1588 = vst.msk [vmem:[#allocation2 + $0x74] sm:$0x1] %vm1560, %v1526
      %p1589 = scmp.eq.s32.totalorder %s23, 0
      // Predicated region
      $region49: #{tpu_custom_call.1} parent=47 // pred_check
        %p1590 = pneg %p1589
      $region50: #{tpu_custom_call.1} parent=47 // pred_check_branch
        %1592 = sbr.rel (%p1590) target = $region52
      $region51: #{tpu_custom_call.1} parent=47 // pred_region
        %1593 = vst.msk [vmem:[#allocation2] sm:$0xf] %vm1557, 0
        %1594 = vst.msk [vmem:[#allocation2 + $0x4] sm:$0xf] %vm1557, 0
        %1595 = vst.msk [vmem:[#allocation2 + $0x8] sm:$0x1] %vm1560, 0
      $region52: #{tpu_custom_call.1} parent=47 // pred_fallthru
        _
      %p1596 = scmp.eq.s32.totalorder %s23, 1
      // Predicated region
      $region53: #{tpu_custom_call.1} parent=47 // pred_check
        %p1597 = pneg %p1596
      $region54: #{tpu_custom_call.1} parent=47 // pred_check_branch
        %1599 = sbr.rel (%p1597) target = $region56
      $region55: #{tpu_custom_call.1} parent=47 // pred_region
        %s1600 = scalar_lea.vmem [#allocation2], 108
        %1601 = vst.msk [vmem:[%s1600] sm:$0xf] %vm1557, 0
        %1602 = vst.msk [vmem:[%s1600 + $0x4] sm:$0xf] %vm1557, 0
        %1603 = vst.msk [vmem:[%s1600 + $0x8] sm:$0x1] %vm1560, 0
      $region56: #{tpu_custom_call.1} parent=47 // pred_fallthru
        _
      %v1604 = vld [vmem:[#allocation2] sm:$0xf]
      %v1605 = vld [vmem:[#allocation2 + $0x4] sm:$0xf]
      %v1606 = vld [vmem:[#allocation2 + $0x8] sm:$0x1]
      %v1607 = vld [vmem:[#allocation2 + $0xc] sm:$0xf]
      %v1608 = vld [vmem:[#allocation2 + $0x10] sm:$0xf]
      %v1609 = vld [vmem:[#allocation2 + $0x14] sm:$0x1]
      %v1610 = vld [vmem:[#allocation2 + $0x18] sm:$0xf]
      %v1611 = vld [vmem:[#allocation2 + $0x1c] sm:$0xf]
      %v1612 = vld [vmem:[#allocation2 + $0x20] sm:$0x1]
      %v1613 = vld [vmem:[#allocation2 + $0x24] sm:$0xf]
      %v1614 = vld [vmem:[#allocation2 + $0x28] sm:$0xf]
      %v1615 = vld [vmem:[#allocation2 + $0x2c] sm:$0x1]
      %v1616 = vld [vmem:[#allocation2 + $0x30] sm:$0xf]
      %v1617 = vld [vmem:[#allocation2 + $0x34] sm:$0xf]
      %v1618 = vld [vmem:[#allocation2 + $0x38] sm:$0x1]
      %v1619 = vld [vmem:[#allocation2 + $0x3c] sm:$0xf]
      %v1620 = vld [vmem:[#allocation2 + $0x40] sm:$0xf]
      %v1621 = vld [vmem:[#allocation2 + $0x44] sm:$0x1]
      %v1622 = vld [vmem:[#allocation2 + $0x48] sm:$0xf]
      %v1623 = vld [vmem:[#allocation2 + $0x4c] sm:$0xf]
      %v1624 = vld [vmem:[#allocation2 + $0x50] sm:$0x1]
      %v1625 = vld [vmem:[#allocation2 + $0x54] sm:$0xf]
      %v1626 = vld [vmem:[#allocation2 + $0x58] sm:$0xf]
      %v1627 = vld [vmem:[#allocation2 + $0x5c] sm:$0x1]
      %v1628 = vld [vmem:[#allocation2 + $0x60] sm:$0xf]
      %v1629 = vld [vmem:[#allocation2 + $0x64] sm:$0xf]
      %v1630 = vld [vmem:[#allocation2 + $0x68] sm:$0x1]
      %v1631 = vld [vmem:[#allocation2 + $0x6c] sm:$0xf]
      %v1632 = vld [vmem:[#allocation2 + $0x70] sm:$0xf]
      %v1633 = vld [vmem:[#allocation2 + $0x74] sm:$0x1]
      %v1650 = vunpack.c.l.b16 %v1604
      %v1651 = vunpack.c.l.b16 %v1605
      %v1652 = vunpack.c.l.b16 %v1607
      %v1653 = vunpack.c.l.b16 %v1608
      %v1654 = vunpack.c.l.b16 %v1610
      %v1655 = vunpack.c.l.b16 %v1611
      %v1656 = vunpack.c.l.b16 %v1613
      %v1657 = vunpack.c.l.b16 %v1614
      %v1658 = vunpack.c.l.b16 %v1616
      %v1659 = vunpack.c.l.b16 %v1617
      %v1660 = vunpack.c.l.b16 %v1619
      %v1661 = vunpack.c.l.b16 %v1620
      %v1662 = vunpack.c.l.b16 %v1622
      %v1663 = vunpack.c.l.b16 %v1623
      %v1664 = vunpack.c.l.b16 %v1625
      %v1665 = vunpack.c.l.b16 %v1626
      %v1666 = vpack.c.b16 %v1651, %v1650
      %v1667 = vpack.c.b16 %v1653, %v1652
      %v1668 = vpack.c.b16 %v1655, %v1654
      %v1669 = vpack.c.b16 %v1657, %v1656
      %v1670 = vpack.c.b16 %v1659, %v1658
      %v1671 = vpack.c.b16 %v1661, %v1660
      %v1672 = vpack.c.b16 %v1663, %v1662
      %v1673 = vpack.c.b16 %v1665, %v1664
      %v1682 = vunpack.c.l.b16 %v1606
      %v1683 = vunpack.c.l.b16 %v1609
      %v1684 = vunpack.c.l.b16 %v1612
      %v1685 = vunpack.c.l.b16 %v1615
      %v1686 = vunpack.c.l.b16 %v1618
      %v1687 = vunpack.c.l.b16 %v1621
      %v1688 = vunpack.c.l.b16 %v1624
      %v1689 = vunpack.c.l.b16 %v1627
      %v1690 = vpack.c.b16 %v1682, %v1682
      %v1691 = vpack.c.b16 %v1683, %v1683
      %v1692 = vpack.c.b16 %v1684, %v1684
      %v1693 = vpack.c.b16 %v1685, %v1685
      %v1694 = vpack.c.b16 %v1686, %v1686
      %v1695 = vpack.c.b16 %v1687, %v1687
      %v1696 = vpack.c.b16 %v1688, %v1688
      %v1697 = vpack.c.b16 %v1689, %v1689
      %v1699 = vshrl.u32 %v1666, 16
      %v1701 = vshll.u32 %v1666, 16
      %v1703 = vrot.slane %v1701, 1
      %v1704 = vor.u32 %v1699, %v1703
      %v1706 = vshll.u32 %v1690, 16
      %v1708 = vrot.slane %v1706, 1
      %v1709 = vsel %vm557, %v1704, %v1708
      %v1711 = vshrl.u32 %v1667, 16
      %v1713 = vshll.u32 %v1667, 16
      %v1715 = vrot.slane %v1713, 1
      %v1716 = vor.u32 %v1711, %v1715
      %v1718 = vshll.u32 %v1691, 16
      %v1720 = vrot.slane %v1718, 1
      %v1721 = vsel %vm557, %v1716, %v1720
      %v1723 = vshrl.u32 %v1668, 16
      %v1725 = vshll.u32 %v1668, 16
      %v1727 = vrot.slane %v1725, 1
      %v1728 = vor.u32 %v1723, %v1727
      %v1730 = vshll.u32 %v1692, 16
      %v1732 = vrot.slane %v1730, 1
      %v1733 = vsel %vm557, %v1728, %v1732
      %v1735 = vshrl.u32 %v1669, 16
      %v1737 = vshll.u32 %v1669, 16
      %v1739 = vrot.slane %v1737, 1
      %v1740 = vor.u32 %v1735, %v1739
      %v1742 = vshll.u32 %v1693, 16
      %v1744 = vrot.slane %v1742, 1
      %v1745 = vsel %vm557, %v1740, %v1744
      %v1747 = vshrl.u32 %v1670, 16
      %v1749 = vshll.u32 %v1670, 16
      %v1751 = vrot.slane %v1749, 1
      %v1752 = vor.u32 %v1747, %v1751
      %v1754 = vshll.u32 %v1694, 16
      %v1756 = vrot.slane %v1754, 1
      %v1757 = vsel %vm557, %v1752, %v1756
      %v1759 = vshrl.u32 %v1671, 16
      %v1761 = vshll.u32 %v1671, 16
      %v1763 = vrot.slane %v1761, 1
      %v1764 = vor.u32 %v1759, %v1763
      %v1766 = vshll.u32 %v1695, 16
      %v1768 = vrot.slane %v1766, 1
      %v1769 = vsel %vm557, %v1764, %v1768
      %v1771 = vshrl.u32 %v1672, 16
      %v1773 = vshll.u32 %v1672, 16
      %v1775 = vrot.slane %v1773, 1
      %v1776 = vor.u32 %v1771, %v1775
      %v1778 = vshll.u32 %v1696, 16
      %v1780 = vrot.slane %v1778, 1
      %v1781 = vsel %vm557, %v1776, %v1780
      %v1783 = vshrl.u32 %v1673, 16
      %v1785 = vshll.u32 %v1673, 16
      %v1787 = vrot.slane %v1785, 1
      %v1788 = vor.u32 %v1783, %v1787
      %v1790 = vshll.u32 %v1697, 16
      %v1792 = vrot.slane %v1790, 1
      %v1793 = vsel %vm557, %v1788, %v1792
      %1794 = vrot.lane.b32.xlu0 %v1709, 4
      %v1795 = vpop.permute.xlu0 %1794
      %1796 = vrot.lane.b32.xlu0 %v1721, 4
      %v1797 = vpop.permute.xlu0 %1796
      %1798 = vrot.lane.b32.xlu0 %v1733, 4
      %v1799 = vpop.permute.xlu0 %1798
      %1800 = vrot.lane.b32.xlu0 %v1745, 4
      %v1801 = vpop.permute.xlu0 %1800
      %1802 = vrot.lane.b32.xlu0 %v1757, 4
      %v1803 = vpop.permute.xlu0 %1802
      %1804 = vrot.lane.b32.xlu0 %v1769, 4
      %v1805 = vpop.permute.xlu0 %1804
      %1806 = vrot.lane.b32.xlu0 %v1781, 4
      %v1807 = vpop.permute.xlu0 %1806
      %1808 = vrot.lane.b32.xlu0 %v1793, 4
      %v1809 = vpop.permute.xlu0 %1808
      %v1810 = vrot.slane %v1666, 1
      %v1811 = vrot.slane %v1690, 1
      %v1812 = vsel %vm698, %v1810, %v1811
      %v1813 = vrot.slane %v1667, 1
      %v1814 = vrot.slane %v1691, 1
      %v1815 = vsel %vm698, %v1813, %v1814
      %v1816 = vrot.slane %v1668, 1
      %v1817 = vrot.slane %v1692, 1
      %v1818 = vsel %vm698, %v1816, %v1817
      %v1819 = vrot.slane %v1669, 1
      %v1820 = vrot.slane %v1693, 1
      %v1821 = vsel %vm698, %v1819, %v1820
      %v1822 = vrot.slane %v1670, 1
      %v1823 = vrot.slane %v1694, 1
      %v1824 = vsel %vm698, %v1822, %v1823
      %v1825 = vrot.slane %v1671, 1
      %v1826 = vrot.slane %v1695, 1
      %v1827 = vsel %vm698, %v1825, %v1826
      %v1828 = vrot.slane %v1672, 1
      %v1829 = vrot.slane %v1696, 1
      %v1830 = vsel %vm698, %v1828, %v1829
      %v1831 = vrot.slane %v1673, 1
      %v1832 = vrot.slane %v1697, 1
      %v1833 = vsel %vm698, %v1831, %v1832
      %1834 = vrot.lane.b32.xlu0 %v1812, 8
      %v1835 = vpop.permute.xlu0 %1834
      %1836 = vrot.lane.b32.xlu0 %v1815, 8
      %v1837 = vpop.permute.xlu0 %1836
      %1838 = vrot.lane.b32.xlu0 %v1818, 8
      %v1839 = vpop.permute.xlu0 %1838
      %1840 = vrot.lane.b32.xlu0 %v1821, 8
      %v1841 = vpop.permute.xlu0 %1840
      %1842 = vrot.lane.b32.xlu0 %v1824, 8
      %v1843 = vpop.permute.xlu0 %1842
      %1844 = vrot.lane.b32.xlu0 %v1827, 8
      %v1845 = vpop.permute.xlu0 %1844
      %1846 = vrot.lane.b32.xlu0 %v1830, 8
      %v1847 = vpop.permute.xlu0 %1846
      %1848 = vrot.lane.b32.xlu0 %v1833, 8
      %v1849 = vpop.permute.xlu0 %1848
      %v1851 = vsel %vm749, %v1666, %v1795
      %v1853 = vsel %vm749, %v1667, %v1797
      %v1855 = vsel %vm749, %v1668, %v1799
      %v1857 = vsel %vm749, %v1669, %v1801
      %v1859 = vsel %vm749, %v1670, %v1803
      %v1861 = vsel %vm749, %v1671, %v1805
      %v1863 = vsel %vm749, %v1672, %v1807
      %v1865 = vsel %vm749, %v1673, %v1809
      %v1867 = vsel %vm770, %v1851, %v1835
      %v1869 = vsel %vm770, %v1853, %v1837
      %v1871 = vsel %vm770, %v1855, %v1839
      %v1873 = vsel %vm770, %v1857, %v1841
      %v1875 = vsel %vm770, %v1859, %v1843
      %v1877 = vsel %vm770, %v1861, %v1845
      %v1879 = vsel %vm770, %v1863, %v1847
      %v1881 = vsel %vm770, %v1865, %v1849
      %v1882 = vsel %vm791, %v1867, 0
      %v1883 = vsel %vm791, %v1869, 0
      %v1884 = vsel %vm791, %v1871, 0
      %v1885 = vsel %vm791, %v1873, 0
      %v1886 = vsel %vm791, %v1875, 0
      %v1887 = vsel %vm791, %v1877, 0
      %v1888 = vsel %vm791, %v1879, 0
      %v1889 = vsel %vm791, %v1881, 0
      %v1890 = vld [vmem:[%s5] sm:$0xf]
      %v1891 = vld [vmem:[%s5 + $0x4] sm:$0xf]
      %v1894 = vunpack.c.l.b16 %v1628
      %v1895 = vunpack.c.l.b16 %v1629
      %v1896 = vpack.c.b16 %v1895, %v1894
      %v1898 = vunpack.c.l.b16 %v1630
      %v1899 = vpack.c.b16 %v1898, %v1898
      %v1901 = vshrl.u32 %v1896, 16
      %v1903 = vshll.u32 %v1896, 16
      %v1905 = vrot.slane %v1903, 1
      %v1906 = vor.u32 %v1901, %v1905
      %v1908 = vshll.u32 %v1899, 16
      %v1910 = vrot.slane %v1908, 1
      %v1911 = vsel %vm557, %v1906, %v1910
      %1912 = vrot.lane.b32.xlu0 %v1911, 4
      %v1913 = vpop.permute.xlu0 %1912
      %v1914 = vrot.slane %v1896, 1
      %v1915 = vrot.slane %v1899, 1
      %v1916 = vsel %vm698, %v1914, %v1915
      %1917 = vrot.lane.b32.xlu0 %v1916, 8
      %v1918 = vpop.permute.xlu0 %1917
      %v1920 = vsel %vm749, %v1896, %v1913
      %v1922 = vsel %vm770, %v1920, %v1918
      %v1923 = vsel %vm791, %v1922, 0
      %s1924 = scalar_lea.vmem %s5, 8
      %v1925 = vld [vmem:[%s1924] sm:$0xf]
      %v1926 = vld [vmem:[%s1924 + $0x4] sm:$0xf]
      %v1929 = vunpack.c.l.b16 %v1925
      %v1930 = vunpack.c.l.b16 %v1926
      %v1931 = vpack.c.b16 %v1930, %v1929
      %v1933 = vsel %vm846, %v1883, 0
      %v1935 = vsel %vm846, %v1884, 0
      %v1937 = vsel %vm846, %v1885, 0
      %v1939 = vsel %vm846, %v1886, 0
      %v1941 = vsel %vm846, %v1887, 0
      %v1943 = vsel %vm846, %v1888, 0
      %v1945 = vsel %vm846, %v1889, 0
      %v1947 = vsel %vm846, %v1923, 0
      %1949 = vmatprep.subr.bf16.mxu0 0
      %1950 = vmatpush1.bf16.msra.mxu0 %v1931
      %1951 = vmatprep.subr.bf16.mxu0 0
      %1952 = vmatpush1.bf16.msra.mxu0 0
      %1953 = vmatprep.subr.bf16.mxu0 0
      %1954 = vmatpush1.bf16.msra.mxu0 0
      %1955 = vmatprep.subr.bf16.mxu0 0
      %1956 = vmatpush1.bf16.msra.mxu0 0
      %1957 = vmatprep.subr.bf16.mxu0 0
      %1958 = vmatpush1.bf16.msra.mxu0 0
      %1959 = vmatprep.subr.bf16.mxu0 0
      %1960 = vmatpush1.bf16.msra.mxu0 0
      %1961 = vmatprep.subr.bf16.mxu0 0
      %1962 = vmatpush1.bf16.msra.mxu0 0
      %1963 = vmatprep.subr.bf16.mxu0 0
      %1964 = vmatpush1.bf16.msra.mxu0 0
      %1965 = vmatprep.subr.bf16.mxu0 0
      %1966 = vmatpush1.bf16.msra.mxu0 0
      %1967 = vmatprep.subr.bf16.mxu0 0
      %1968 = vmatpush1.bf16.msra.mxu0 0
      %1969 = vmatprep.subr.bf16.mxu0 0
      %1970 = vmatpush1.bf16.msra.mxu0 0
      %1971 = vmatprep.subr.bf16.mxu0 0
      %1972 = vmatpush1.bf16.msra.mxu0 0
      %1973 = vmatprep.subr.bf16.mxu0 0
      %1974 = vmatpush1.bf16.msra.mxu0 0
      %1975 = vmatprep.subr.bf16.mxu0 0
      %1976 = vmatpush1.bf16.msra.mxu0 0
      %1977 = vmatprep.subr.bf16.mxu0 0
      %1978 = vmatpush1.bf16.msra.mxu0 0
      %1979 = vmatprep.subr.bf16.mxu0 0
      %1980 = vmatpush1.bf16.msra.mxu0 0
      %1981 = vmatprep.mubr.bf16.mxu0 0
      %1982 = vmatmul.mubr.bf16.gmra.mrb[0].mxu0 %v1933
      %v1983 = vpop.f32.mrb[0].mxu0
      %v1984 = vadd.f32 0.0, %v1983
      %v1985 = vpop.f32.mrb[0].mxu0
      %v1986 = vpop.f32.mrb[0].mxu0
      %v1987 = vadd.f32 0.0, %v1986
      %v1988 = vpop.f32.mrb[0].mxu0
      %1989 = vmatprep.mubr.bf16.mxu0 0
      %1990 = vmatmul.mubr.bf16.gmra.mrb[0].mxu0 %v1935
      %v1991 = vpop.f32.mrb[0].mxu0
      %v1992 = vadd.f32 0.0, %v1991
      %v1993 = vpop.f32.mrb[0].mxu0
      %v1994 = vpop.f32.mrb[0].mxu0
      %v1995 = vadd.f32 0.0, %v1994
      %v1996 = vpop.f32.mrb[0].mxu0
      %1997 = vmatprep.mubr.bf16.mxu0 0
      %1998 = vmatmul.mubr.bf16.gmra.mrb[0].mxu0 %v1937
      %v1999 = vpop.f32.mrb[0].mxu0
      %v2000 = vadd.f32 0.0, %v1999
      %v2001 = vpop.f32.mrb[0].mxu0
      %v2002 = vpop.f32.mrb[0].mxu0
      %v2003 = vadd.f32 0.0, %v2002
      %v2004 = vpop.f32.mrb[0].mxu0
      %2005 = vmatprep.mubr.bf16.mxu0 0
      %2006 = vmatmul.mubr.bf16.gmra.mrb[0].mxu0 %v1939
      %v2007 = vpop.f32.mrb[0].mxu0
      %v2008 = vadd.f32 0.0, %v2007
      %v2009 = vpop.f32.mrb[0].mxu0
      %v2010 = vpop.f32.mrb[0].mxu0
      %v2011 = vadd.f32 0.0, %v2010
      %v2012 = vpop.f32.mrb[0].mxu0
      %2013 = vmatprep.mubr.bf16.mxu0 0
      %2014 = vmatmul.mubr.bf16.gmra.mrb[0].mxu0 %v1941
      %v2015 = vpop.f32.mrb[0].mxu0
      %v2016 = vadd.f32 0.0, %v2015
      %v2017 = vpop.f32.mrb[0].mxu0
      %v2018 = vpop.f32.mrb[0].mxu0
      %v2019 = vadd.f32 0.0, %v2018
      %v2020 = vpop.f32.mrb[0].mxu0
      %2021 = vmatprep.mubr.bf16.mxu0 0
      %2022 = vmatmul.mubr.bf16.gmra.mrb[0].mxu0 %v1943
      %v2023 = vpop.f32.mrb[0].mxu0
      %v2024 = vadd.f32 0.0, %v2023
      %v2025 = vpop.f32.mrb[0].mxu0
      %v2026 = vpop.f32.mrb[0].mxu0
      %v2027 = vadd.f32 0.0, %v2026
      %v2028 = vpop.f32.mrb[0].mxu0
      %2029 = vmatprep.mubr.bf16.mxu0 0
      %2030 = vmatmul.mubr.bf16.gmra.mrb[0].mxu0 %v1945
      %v2031 = vpop.f32.mrb[0].mxu0
      %v2032 = vadd.f32 0.0, %v2031
      %v2033 = vpop.f32.mrb[0].mxu0
      %v2034 = vpop.f32.mrb[0].mxu0
      %v2035 = vadd.f32 0.0, %v2034
      %v2036 = vpop.f32.mrb[0].mxu0
      %2037 = vmatprep.mubr.bf16.mxu0 0
      %2038 = vmatmul.mubr.bf16.gmra.mrb[0].mxu0 %v1947
      %v2039 = vpop.f32.mrb[0].mxu0
      %v2040 = vadd.f32 0.0, %v2039
      %v2041 = vpop.f32.mrb[0].mxu0
      %v2042 = vpop.f32.mrb[0].mxu0
      %v2043 = vadd.f32 0.0, %v2042
      %v2044 = vpop.f32.mrb[0].mxu0
      %2045 = vdwg.mxu0
      %v2048 = vunpack.c.l.b16 %v1890
      %v2049 = vunpack.c.l.b16 %v1891
      %v2050 = vpack.c.b16 %v2049, %v2048
      %v2052 = vsel %vm846, %v1882, 0
      %2054 = vmatprep.subr.bf16.mxu0 0
      %2055 = vmatpush1.bf16.msra.mxu0 %v2050
      %2056 = vmatprep.subr.bf16.mxu0 0
      %2057 = vmatpush1.bf16.msra.mxu0 0
      %2058 = vmatprep.subr.bf16.mxu0 0
      %2059 = vmatpush1.bf16.msra.mxu0 0
      %2060 = vmatprep.subr.bf16.mxu0 0
      %2061 = vmatpush1.bf16.msra.mxu0 0
      %2062 = vmatprep.subr.bf16.mxu0 0
      %2063 = vmatpush1.bf16.msra.mxu0 0
      %2064 = vmatprep.subr.bf16.mxu0 0
      %2065 = vmatpush1.bf16.msra.mxu0 0
      %2066 = vmatprep.subr.bf16.mxu0 0
      %2067 = vmatpush1.bf16.msra.mxu0 0
      %2068 = vmatprep.subr.bf16.mxu0 0
      %2069 = vmatpush1.bf16.msra.mxu0 0
      %2070 = vmatprep.subr.bf16.mxu0 0
      %2071 = vmatpush1.bf16.msra.mxu0 0
      %2072 = vmatprep.subr.bf16.mxu0 0
      %2073 = vmatpush1.bf16.msra.mxu0 0
      %2074 = vmatprep.subr.bf16.mxu0 0
      %2075 = vmatpush1.bf16.msra.mxu0 0
      %2076 = vmatprep.subr.bf16.mxu0 0
      %2077 = vmatpush1.bf16.msra.mxu0 0
      %2078 = vmatprep.subr.bf16.mxu0 0
      %2079 = vmatpush1.bf16.msra.mxu0 0
      %2080 = vmatprep.subr.bf16.mxu0 0
      %2081 = vmatpush1.bf16.msra.mxu0 0
      %2082 = vmatprep.subr.bf16.mxu0 0
      %2083 = vmatpush1.bf16.msra.mxu0 0
      %2084 = vmatprep.subr.bf16.mxu0 0
      %2085 = vmatpush1.bf16.msra.mxu0 0
      %2086 = vmatprep.mubr.bf16.mxu0 0
      %2087 = vmatmul.mubr.bf16.gmra.mrb[0].mxu0 %v2052
      %v2088 = vpop.f32.mrb[0].mxu0
      %v2089 = vadd.f32 %v1984, %v2088
      %v2090 = vpop.f32.mrb[0].mxu0
      %v2091 = vpop.f32.mrb[0].mxu0
      %v2092 = vadd.f32 %v1987, %v2091
      %v2093 = vpop.f32.mrb[0].mxu0
      %2094 = vmatprep.mubr.bf16.mxu0 0
      %2095 = vmatmul.mubr.bf16.gmra.mrb[0].mxu0 %v1933
      %v2096 = vpop.f32.mrb[0].mxu0
      %v2097 = vadd.f32 %v1992, %v2096
      %v2098 = vpop.f32.mrb[0].mxu0
      %v2099 = vpop.f32.mrb[0].mxu0
      %v2100 = vadd.f32 %v1995, %v2099
      %v2101 = vpop.f32.mrb[0].mxu0
      %2102 = vmatprep.mubr.bf16.mxu0 0
      %2103 = vmatmul.mubr.bf16.gmra.mrb[0].mxu0 %v1935
      %v2104 = vpop.f32.mrb[0].mxu0
      %v2105 = vadd.f32 %v2000, %v2104
      %v2106 = vpop.f32.mrb[0].mxu0
      %v2107 = vpop.f32.mrb[0].mxu0
      %v2108 = vadd.f32 %v2003, %v2107
      %v2109 = vpop.f32.mrb[0].mxu0
      %2110 = vmatprep.mubr.bf16.mxu0 0
      %2111 = vmatmul.mubr.bf16.gmra.mrb[0].mxu0 %v1937
      %v2112 = vpop.f32.mrb[0].mxu0
      %v2113 = vadd.f32 %v2008, %v2112
      %v2114 = vpop.f32.mrb[0].mxu0
      %v2115 = vpop.f32.mrb[0].mxu0
      %v2116 = vadd.f32 %v2011, %v2115
      %v2117 = vpop.f32.mrb[0].mxu0
      %2118 = vmatprep.mubr.bf16.mxu0 0
      %2119 = vmatmul.mubr.bf16.gmra.mrb[0].mxu0 %v1939
      %v2120 = vpop.f32.mrb[0].mxu0
      %v2121 = vadd.f32 %v2016, %v2120
      %v2122 = vpop.f32.mrb[0].mxu0
      %v2123 = vpop.f32.mrb[0].mxu0
      %v2124 = vadd.f32 %v2019, %v2123
      %v2125 = vpop.f32.mrb[0].mxu0
      %2126 = vmatprep.mubr.bf16.mxu0 0
      %2127 = vmatmul.mubr.bf16.gmra.mrb[0].mxu0 %v1941
      %v2128 = vpop.f32.mrb[0].mxu0
      %v2129 = vadd.f32 %v2024, %v2128
      %v2130 = vpop.f32.mrb[0].mxu0
      %v2131 = vpop.f32.mrb[0].mxu0
      %v2132 = vadd.f32 %v2027, %v2131
      %v2133 = vpop.f32.mrb[0].mxu0
      %2134 = vmatprep.mubr.bf16.mxu0 0
      %2135 = vmatmul.mubr.bf16.gmra.mrb[0].mxu0 %v1943
      %v2136 = vpop.f32.mrb[0].mxu0
      %v2137 = vadd.f32 %v2032, %v2136
      %v2138 = vpop.f32.mrb[0].mxu0
      %v2139 = vpop.f32.mrb[0].mxu0
      %v2140 = vadd.f32 %v2035, %v2139
      %v2141 = vpop.f32.mrb[0].mxu0
      %2142 = vmatprep.mubr.bf16.mxu0 0
      %2143 = vmatmul.mubr.bf16.gmra.mrb[0].mxu0 %v1945
      %v2144 = vpop.f32.mrb[0].mxu0
      %v2145 = vadd.f32 %v2040, %v2144
      %v2146 = vpop.f32.mrb[0].mxu0
      %v2147 = vpop.f32.mrb[0].mxu0
      %v2148 = vadd.f32 %v2043, %v2147
      %v2149 = vpop.f32.mrb[0].mxu0
      %2150 = vdwg.mxu0
      %v2153 = vunpack.c.l.b16 %v1631
      %v2154 = vunpack.c.l.b16 %v1632
      %v2155 = vpack.c.b16 %v2154, %v2153
      %v2157 = vunpack.c.l.b16 %v1633
      %v2158 = vpack.c.b16 %v2157, %v2157
      %v2160 = vshrl.u32 %v2155, 16
      %v2162 = vshll.u32 %v2155, 16
      %v2164 = vrot.slane %v2162, 1
      %v2165 = vor.u32 %v2160, %v2164
      %v2167 = vshll.u32 %v2158, 16
      %v2169 = vrot.slane %v2167, 1
      %v2170 = vsel %vm557, %v2165, %v2169
      %2171 = vrot.lane.b32.xlu0 %v2170, 4
      %v2172 = vpop.permute.xlu0 %2171
      %v2173 = vrot.slane %v2155, 1
      %v2174 = vrot.slane %v2158, 1
      %v2175 = vsel %vm698, %v2173, %v2174
      %2176 = vrot.lane.b32.xlu0 %v2175, 8
      %v2177 = vpop.permute.xlu0 %2176
      %v2179 = vsel %vm749, %v2155, %v2172
      %v2181 = vsel %vm770, %v2179, %v2177
      %v2182 = vsel %vm791, %v2181, 0
      %s2183 = scalar_lea.vmem %s5, 16
      %v2184 = vld [vmem:[%s2183] sm:$0xf]
      %v2185 = vld [vmem:[%s2183 + $0x4] sm:$0xf]
      %v2188 = vunpack.c.l.b16 %v2184
      %v2189 = vunpack.c.l.b16 %v2185
      %v2190 = vpack.c.b16 %v2189, %v2188
      %v2192 = vsel %vm846, %v2182, 0
      %2194 = vmatprep.subr.bf16.mxu0 0
      %2195 = vmatpush1.bf16.msra.mxu0 %v2190
      %2196 = vmatprep.subr.bf16.mxu0 0
      %2197 = vmatpush1.bf16.msra.mxu0 0
      %2198 = vmatprep.subr.bf16.mxu0 0
      %2199 = vmatpush1.bf16.msra.mxu0 0
      %2200 = vmatprep.subr.bf16.mxu0 0
      %2201 = vmatpush1.bf16.msra.mxu0 0
      %2202 = vmatprep.subr.bf16.mxu0 0
      %2203 = vmatpush1.bf16.msra.mxu0 0
      %2204 = vmatprep.subr.bf16.mxu0 0
      %2205 = vmatpush1.bf16.msra.mxu0 0
      %2206 = vmatprep.subr.bf16.mxu0 0
      %2207 = vmatpush1.bf16.msra.mxu0 0
      %2208 = vmatprep.subr.bf16.mxu0 0
      %2209 = vmatpush1.bf16.msra.mxu0 0
      %2210 = vmatprep.subr.bf16.mxu0 0
      %2211 = vmatpush1.bf16.msra.mxu0 0
      %2212 = vmatprep.subr.bf16.mxu0 0
      %2213 = vmatpush1.bf16.msra.mxu0 0
      %2214 = vmatprep.subr.bf16.mxu0 0
      %2215 = vmatpush1.bf16.msra.mxu0 0
      %2216 = vmatprep.subr.bf16.mxu0 0
      %2217 = vmatpush1.bf16.msra.mxu0 0
      %2218 = vmatprep.subr.bf16.mxu0 0
      %2219 = vmatpush1.bf16.msra.mxu0 0
      %2220 = vmatprep.subr.bf16.mxu0 0
      %2221 = vmatpush1.bf16.msra.mxu0 0
      %2222 = vmatprep.subr.bf16.mxu0 0
      %2223 = vmatpush1.bf16.msra.mxu0 0
      %2224 = vmatprep.subr.bf16.mxu0 0
      %2225 = vmatpush1.bf16.msra.mxu0 0
      %2226 = vmatprep.mubr.bf16.mxu0 0
      %2227 = vmatmul.mubr.bf16.gmra.mrb[0].mxu0 %v1935
      %v2228 = vpop.f32.mrb[0].mxu0
      %v2229 = vadd.f32 0.0, %v2228
      %v2230 = vpop.f32.mrb[0].mxu0
      %v2231 = vpop.f32.mrb[0].mxu0
      %v2232 = vadd.f32 0.0, %v2231
      %v2233 = vpop.f32.mrb[0].mxu0
      %2234 = vmatprep.mubr.bf16.mxu0 0
      %2235 = vmatmul.mubr.bf16.gmra.mrb[0].mxu0 %v1937
      %v2236 = vpop.f32.mrb[0].mxu0
      %v2237 = vadd.f32 0.0, %v2236
      %v2238 = vpop.f32.mrb[0].mxu0
      %v2239 = vpop.f32.mrb[0].mxu0
      %v2240 = vadd.f32 0.0, %v2239
      %v2241 = vpop.f32.mrb[0].mxu0
      %2242 = vmatprep.mubr.bf16.mxu0 0
      %2243 = vmatmul.mubr.bf16.gmra.mrb[0].mxu0 %v1939
      %v2244 = vpop.f32.mrb[0].mxu0
      %v2245 = vadd.f32 0.0, %v2244
      %v2246 = vpop.f32.mrb[0].mxu0
      %v2247 = vpop.f32.mrb[0].mxu0
      %v2248 = vadd.f32 0.0, %v2247
      %v2249 = vpop.f32.mrb[0].mxu0
      %2250 = vmatprep.mubr.bf16.mxu0 0
      %2251 = vmatmul.mubr.bf16.gmra.mrb[0].mxu0 %v1941
      %v2252 = vpop.f32.mrb[0].mxu0
      %v2253 = vadd.f32 0.0, %v2252
      %v2254 = vpop.f32.mrb[0].mxu0
      %v2255 = vpop.f32.mrb[0].mxu0
      %v2256 = vadd.f32 0.0, %v2255
      %v2257 = vpop.f32.mrb[0].mxu0
      %2258 = vmatprep.mubr.bf16.mxu0 0
      %2259 = vmatmul.mubr.bf16.gmra.mrb[0].mxu0 %v1943
      %v2260 = vpop.f32.mrb[0].mxu0
      %v2261 = vadd.f32 0.0, %v2260
      %v2262 = vpop.f32.mrb[0].mxu0
      %v2263 = vpop.f32.mrb[0].mxu0
      %v2264 = vadd.f32 0.0, %v2263
      %v2265 = vpop.f32.mrb[0].mxu0
      %2266 = vmatprep.mubr.bf16.mxu0 0
      %2267 = vmatmul.mubr.bf16.gmra.mrb[0].mxu0 %v1945
      %v2268 = vpop.f32.mrb[0].mxu0
      %v2269 = vadd.f32 0.0, %v2268
      %v2270 = vpop.f32.mrb[0].mxu0
      %v2271 = vpop.f32.mrb[0].mxu0
      %v2272 = vadd.f32 0.0, %v2271
      %v2273 = vpop.f32.mrb[0].mxu0
      %2274 = vmatprep.mubr.bf16.mxu0 0
      %2275 = vmatmul.mubr.bf16.gmra.mrb[0].mxu0 %v1947
      %v2276 = vpop.f32.mrb[0].mxu0
      %v2277 = vadd.f32 0.0, %v2276
      %v2278 = vpop.f32.mrb[0].mxu0
      %v2279 = vpop.f32.mrb[0].mxu0
      %v2280 = vadd.f32 0.0, %v2279
      %v2281 = vpop.f32.mrb[0].mxu0
      %2282 = vmatprep.mubr.bf16.mxu0 0
      %2283 = vmatmul.mubr.bf16.gmra.mrb[0].mxu0 %v2192
      %v2284 = vpop.f32.mrb[0].mxu0
      %v2285 = vadd.f32 0.0, %v2284
      %v2286 = vpop.f32.mrb[0].mxu0
      %v2287 = vpop.f32.mrb[0].mxu0
      %v2288 = vadd.f32 0.0, %v2287
      %v2289 = vpop.f32.mrb[0].mxu0
      %2290 = vdwg.mxu0
      %v2291 = vadd.f32 %v2089, %v2229
      %v2292 = vadd.f32 %v2092, %v2232
      %v2293 = vadd.f32 %v2097, %v2237
      %v2294 = vadd.f32 %v2100, %v2240
      %v2295 = vadd.f32 %v2105, %v2245
      %v2296 = vadd.f32 %v2108, %v2248
      %v2297 = vadd.f32 %v2113, %v2253
      %v2298 = vadd.f32 %v2116, %v2256
      %v2299 = vadd.f32 %v2121, %v2261
      %v2300 = vadd.f32 %v2124, %v2264
      %v2301 = vadd.f32 %v2129, %v2269
      %v2302 = vadd.f32 %v2132, %v2272
      %v2303 = vadd.f32 %v2137, %v2277
      %v2304 = vadd.f32 %v2140, %v2280
      %v2305 = vadd.f32 %v2145, %v2285
      %v2306 = vadd.f32 %v2148, %v2288
      %v2307 = vld [vmem:[%s6] sm:$0x1]
      %v2309 = vlaneseq
      %v2310 = vshrl.u32 %v2309, 7
      %v2311 = vsub.s32 0, %v2310
      %v2312 = vrot.slane %v2307, %v2311
      %v2314 = vadd.f32 %v2291, %v2312
      %v2315 = vadd.f32 %v2292, %v2312
      %v2316 = vadd.f32 %v2293, %v2312
      %v2317 = vadd.f32 %v2294, %v2312
      %v2318 = vadd.f32 %v2295, %v2312
      %v2319 = vadd.f32 %v2296, %v2312
      %v2320 = vadd.f32 %v2297, %v2312
      %v2321 = vadd.f32 %v2298, %v2312
      %v2322 = vadd.f32 %v2299, %v2312
      %v2323 = vadd.f32 %v2300, %v2312
      %v2324 = vadd.f32 %v2301, %v2312
      %v2325 = vadd.f32 %v2302, %v2312
      %v2326 = vadd.f32 %v2303, %v2312
      %v2327 = vadd.f32 %v2304, %v2312
      %v2328 = vadd.f32 %v2305, %v2312
      %v2329 = vadd.f32 %v2306, %v2312
      %v2330 = vld [vmem:[%s427] sm:$0xff]
      %v2331 = vld [vmem:[%s427 + $0x8] sm:$0xff]
      %v2332 = vld [vmem:[%s427 + $0x10] sm:$0xff]
      %v2333 = vld [vmem:[%s427 + $0x18] sm:$0xff]
      %v2334 = vld [vmem:[%s427 + $0x20] sm:$0xff]
      %v2335 = vld [vmem:[%s427 + $0x28] sm:$0xff]
      %v2336 = vld [vmem:[%s427 + $0x30] sm:$0xff]
      %v2337 = vld [vmem:[%s427 + $0x38] sm:$0xff]
      %v2338 = vld [vmem:[%s427 + $0x40] sm:$0xff]
      %v2339 = vld [vmem:[%s427 + $0x48] sm:$0xff]
      %v2340 = vld [vmem:[%s427 + $0x50] sm:$0xff]
      %v2341 = vld [vmem:[%s427 + $0x58] sm:$0xff]
      %v2342 = vld [vmem:[%s427 + $0x60] sm:$0xff]
      %v2343 = vld [vmem:[%s427 + $0x68] sm:$0xff]
      %v2344 = vld [vmem:[%s427 + $0x70] sm:$0xff]
      %v2345 = vld [vmem:[%s427 + $0x78] sm:$0xff]
      %v2346 = vadd.f32 %v2330, %v2314
      %v2347 = vadd.f32 %v2331, %v2315
      %v2348 = vadd.f32 %v2332, %v2316
      %v2349 = vadd.f32 %v2333, %v2317
      %v2350 = vadd.f32 %v2334, %v2318
      %v2351 = vadd.f32 %v2335, %v2319
      %v2352 = vadd.f32 %v2336, %v2320
      %v2353 = vadd.f32 %v2337, %v2321
      %v2354 = vadd.f32 %v2338, %v2322
      %v2355 = vadd.f32 %v2339, %v2323
      %v2356 = vadd.f32 %v2340, %v2324
      %v2357 = vadd.f32 %v2341, %v2325
      %v2358 = vadd.f32 %v2342, %v2326
      %v2359 = vadd.f32 %v2343, %v2327
      %v2360 = vadd.f32 %v2344, %v2328
      %v2361 = vadd.f32 %v2345, %v2329
      %2362 = vst.msk [vmem:[%s438] sm:$0xff] %vm749, %v2346
      %2363 = vst.msk [vmem:[%s438 + $0x8] sm:$0xff] %vm749, %v2347
      %2364 = vst.msk [vmem:[%s438 + $0x10] sm:$0xff] %vm749, %v2348
      %2365 = vst.msk [vmem:[%s438 + $0x18] sm:$0xff] %vm749, %v2349
      %2366 = vst.msk [vmem:[%s438 + $0x20] sm:$0xff] %vm749, %v2350
      %2367 = vst.msk [vmem:[%s438 + $0x28] sm:$0xff] %vm749, %v2351
      %2368 = vst.msk [vmem:[%s438 + $0x30] sm:$0xff] %vm749, %v2352
      %2369 = vst.msk [vmem:[%s438 + $0x38] sm:$0xff] %vm749, %v2353
      %2370 = vst.msk [vmem:[%s438 + $0x40] sm:$0xff] %vm749, %v2354
      %2371 = vst.msk [vmem:[%s438 + $0x48] sm:$0xff] %vm749, %v2355
      %2372 = vst.msk [vmem:[%s438 + $0x50] sm:$0xff] %vm749, %v2356
      %2373 = vst.msk [vmem:[%s438 + $0x58] sm:$0xff] %vm749, %v2357
      %2374 = vst.msk [vmem:[%s438 + $0x60] sm:$0xff] %vm749, %v2358
      %2375 = vst.msk [vmem:[%s438 + $0x68] sm:$0xff] %vm749, %v2359
      %2376 = vst.msk [vmem:[%s438 + $0x70] sm:$0xff] %vm749, %v2360
      %2377 = vst.msk [vmem:[%s438 + $0x78] sm:$0xff] %vm749, %v2361
      %s2378 = smul.u32 8, %s23
      %p2379 = scmp.lt.s32.totalorder %s22, 1
      %s2380 = scalar_select %p2379, %s22, 1
      %p2381 = scmp.lt.s32.totalorder %s2378, 15
      %s2382 = scalar_select %p2381, %s2378, 15
      %s2383 = smul.addr %s2382, 2
      %s2384 = smul.addr %s2380, 32
      %s2385 = sadd.s32 %s2383, %s2384
      %s2386 = smul.addr %s2385, 8
      %s2387 = scalar_lea.vmem %s7, %s2386
      // Predicated region
      $region57: #{tpu_custom_call.1} parent=47 // pred_check
        %p2388 = pneg %p222
      $region58: #{tpu_custom_call.1} parent=47 // pred_check_branch
        %2390 = sbr.rel (%p2388) target = $region60
      $region59: #{tpu_custom_call.1} parent=47 // pred_region
        %s2391 = smul.u32 8, %s23
      $region60: #{tpu_custom_call.1} parent=47 // pred_fallthru
        _
    $region48: #{tpu_custom_call.1} parent=5 // pred_fallthru
      _
    %p2392 = scmp.le.s32.totalorder 2, %s13
    // Predicated region
    $region61: #{tpu_custom_call.1} parent=5 // pred_check
      %p2393 = pneg %p2392
    $region62: #{tpu_custom_call.1} parent=5 // pred_check_branch
      %2395 = sbr.rel (%p2393) target = $region64
    $region63: #{tpu_custom_call.1} parent=5 // pred_region
      %s2396 = ssub.s32 %s13, 2
      // Predicated region
      $region65: #{tpu_custom_call.1} parent=63 // pred_check
        %p2397 = pneg %p228
      $region66: #{tpu_custom_call.1} parent=63 // pred_check_branch
        %2399 = sbr.rel (%p2397) target = $region68
      $region67: #{tpu_custom_call.1} parent=63 // pred_region
        %s2400 = smul.u32 8, %s25
        %p2401 = scmp.lt.s32.totalorder %s24, 1
        %s2402 = scalar_select %p2401, %s24, 1
        %p2403 = scmp.lt.s32.totalorder %s2400, 15
        %s2404 = scalar_select %p2403, %s2400, 15
        %s2405 = smul.addr %s2404, 2
        %s2406 = smul.addr %s2402, 32
        %s2407 = sadd.s32 %s2405, %s2406
        %s2408 = smul.addr %s2407, 8
        %s2409 = scalar_lea.vmem %s7, %s2408
      $region68: #{tpu_custom_call.1} parent=63 // pred_fallthru
        _
    $region64: #{tpu_custom_call.1} parent=5 // pred_fallthru
      _
  $region6: #{tpu_custom_call.1} parent=0 // loop_footer
    %s17 = sadd.s32 1, %s13
  $region7: #{tpu_custom_call.1} parent=0 // loop_footer_branch
    %12 = sbr.rel target = $region3
  $region8: #{tpu_custom_call.1} parent=0 // loop_exit
    _

</llo_original>
